<compile_context>
chip_gen: v5e
topology: v5e:2x2
jax: 0.10.0
libtpu: 0.0.40
codegen_flags: <defaults>
</compile_context>

<pallas_src>
import math

import jax
import jax.numpy as jnp
from jax.experimental import pallas as pl
from jax.experimental.pallas import tpu as pltpu  # noqa: F401  (TPU backend assumed)

# ----------------------------- hyperparameters --------------------------------
B = 2                 # batch
L = 8                 # sequence length
D_MODEL = 32          # d_model
N_HEADS = 4
D_K = D_MODEL // N_HEADS   # 8
D_V = D_MODEL // N_HEADS   # 8
EPS = 1e-6
BH = B * N_HEADS      # folded (batch, head) axis


def _layernorm(x, gamma, beta):
    # x: (L, D); gamma/beta: (1, D).  Biased variance, matches nn.LayerNorm.
    mean = jnp.mean(x, axis=-1, keepdims=True)
    var = jnp.mean((x - mean) * (x - mean), axis=-1, keepdims=True)
    return (x - mean) * jax.lax.rsqrt(var + EPS) * gamma + beta


# ------------------------------- Pallas kernel --------------------------------
def mha_kernel(q_ref, k_ref, v_ref, wq_ref, wk_ref, wv_ref, wo_ref,
               g_ref, b_ref, out_ref, attn_ref):
    """Fused multi-head attention forward for the whole batch.

    q_ref/k_ref/v_ref : (B, L, D)        activations (residual comes from q)
    wq_ref/wk_ref     : (B*H, D, d_k)    per-(batch,head) projection weights
    wv_ref            : (B*H, D, d_v)
    wo_ref            : (B*H, d_v, D)    per-(batch,head) row-blocks of `fc`
    g_ref/b_ref       : (1, D)           LayerNorm affine
    out_ref           : (B, L, D)
    attn_ref          : (B*H, L, L)
    """
    xq = q_ref[...]
    xk = k_ref[...]
    xv = v_ref[...]

    def expand(x):  # (B, L, D) -> (B*H, L, D): replicate over heads (major dims only)
        return jnp.broadcast_to(x[:, None, :, :],
                                (B, N_HEADS, L, D_MODEL)).reshape(BH, L, D_MODEL)

    # Head-and-batch-batched projections: one 3-D einsum each.
    qh = jnp.einsum('nld,ndk->nlk', expand(xq), wq_ref[...],
                    preferred_element_type=jnp.float32)          # (BH, L, d_k)
    kh = jnp.einsum('nld,ndk->nlk', expand(xk), wk_ref[...],
                    preferred_element_type=jnp.float32)          # (BH, L, d_k)
    vh = jnp.einsum('nld,ndk->nlk', expand(xv), wv_ref[...],
                    preferred_element_type=jnp.float32)          # (BH, L, d_v)

    # Scaled dot-product attention (q / temperature, temperature = sqrt(d_k)).
    scale = 1.0 / math.sqrt(D_K)
    s = jnp.einsum('nld,nmd->nlm', qh * scale, kh,
                   preferred_element_type=jnp.float32)           # (BH, L, L)
    s = s - jnp.max(s, axis=-1, keepdims=True)
    e = jnp.exp(s)
    p = e / jnp.sum(e, axis=-1, keepdims=True)                   # softmax (one pass)
    attn_ref[...] = p                                            # single store

    o = jnp.einsum('nlm,nmd->nld', p, vh,
                   preferred_element_type=jnp.float32)           # (BH, L, d_v)
    # concat-over-heads @ fc  ==  sum over heads of (o_h @ fc_rows_h)
    proj = jnp.einsum('nld,nde->nle', o, wo_ref[...],
                      preferred_element_type=jnp.float32)        # (BH, L, D)

    gamma = g_ref[...]
    beta = b_ref[...]
    for b in range(B):                       # static unroll, B = 2
        acc = proj[b * N_HEADS]
        for h in range(1, N_HEADS):
            acc = acc + proj[b * N_HEADS + h]
        y = acc + xq[b]                      # residual (dropout = identity in eval)
        out_ref[b] = _layernorm(y, gamma, beta)


# ------------------------------- wrappers --------------------------------------
def pack_params(params):
    """One-time host-side layout prep: build per-(batch,head) weight views so the
    kernel only does leading-batch-dim einsums (no in-kernel minor-dim reshapes)."""
    def per_head_in(w, dh):  # (D, H*dh) -> (H, D, dh) -> replicated (B*H, D, dh)
        w3 = jnp.transpose(w.reshape(D_MODEL, N_HEADS, dh), (1, 0, 2))
        return jnp.broadcast_to(w3[None], (B, N_HEADS, D_MODEL, dh)
                                ).reshape(BH, D_MODEL, dh)

    wo3 = params["wo"].reshape(N_HEADS, D_V, D_MODEL)            # fc rows per head
    wo_bh = jnp.broadcast_to(wo3[None], (B, N_HEADS, D_V, D_MODEL)
                             ).reshape(BH, D_V, D_MODEL)
    return {"wq": per_head_in(params["wq"], D_K),
            "wk": per_head_in(params["wk"], D_K),
            "wv": per_head_in(params["wv"], D_V),
            "wo": wo_bh,
            "g": params["g"], "b": params["b"]}


def multi_head_attention(q, k, v, packed):
    out, attn_flat = pl.pallas_call(
        mha_kernel,
        out_shape=(jax.ShapeDtypeStruct((B, L, D_MODEL), jnp.float32),
                   jax.ShapeDtypeStruct((BH, L, L), jnp.float32)),
    )(q, k, v, packed["wq"], packed["wk"], packed["wv"], packed["wo"],
      packed["g"], packed["b"])
    return out, attn_flat.reshape(B, N_HEADS, L, L)


# ------------------------------- reference -------------------------------------
def reference_mha(q, k, v, params):
    """Pure-JAX reference with the exact PyTorch MultiHeadAttention semantics."""
    def split_heads(x, w, dh):
        y = jnp.einsum('bld,de->ble', x, w)
        return jnp.transpose(y.reshape(B, L, N_HEADS, dh), (0, 2, 1, 3))

    qh = split_heads(q, params["wq"], D_K) / math.sqrt(D_K)
    kh = split_heads(k, params["wk"], D_K)
    vh = split_heads(v, params["wv"], D_V)
    s = jnp.einsum('bhld,bhmd->bhlm', qh, kh)
    p = jax.nn.softmax(s, axis=-1)
    o = jnp.einsum('bhlm,bhmd->bhld', p, vh)
    o = jnp.transpose(o, (0, 2, 1, 3)).reshape(B, L, N_HEADS * D_V)
    y = jnp.einsum('bld,de->ble', o, params["wo"]) + q
    mean = jnp.mean(y, axis=-1, keepdims=True)
    var = jnp.mean((y - mean) ** 2, axis=-1, keepdims=True)
    out = (y - mean) * jax.lax.rsqrt(var + EPS) * params["g"] + params["b"]
    return out, p


def init_params(key):
    ks = jax.random.split(key, 6)
    s = 0.1
    return {
        "wq": s * jax.random.normal(ks[0], (D_MODEL, N_HEADS * D_K), jnp.float32),
        "wk": s * jax.random.normal(ks[1], (D_MODEL, N_HEADS * D_K), jnp.float32),
        "wv": s * jax.random.normal(ks[2], (D_MODEL, N_HEADS * D_V), jnp.float32),
        "wo": s * jax.random.normal(ks[3], (N_HEADS * D_V, D_MODEL), jnp.float32),
        "g": 1.0 + 0.1 * jax.random.normal(ks[4], (1, D_MODEL), jnp.float32),
        "b": 0.1 * jax.random.normal(ks[5], (1, D_MODEL), jnp.float32),
    }


if __name__ == "__main__":
    key = jax.random.PRNGKey(0)
    kq, kk, kv, kp = jax.random.split(key, 4)
    q = jax.random.normal(kq, (B, L, D_MODEL), dtype=jnp.float32)
    k = jax.random.normal(kk, (B, L, D_MODEL), dtype=jnp.float32)
    v = jax.random.normal(kv, (B, L, D_MODEL), dtype=jnp.float32)

    params = init_params(kp)
    packed = pack_params(params)

    fwd = jax.jit(multi_head_attention)
    out, attn = fwd(q, k, v, packed)
    jax.block_until_ready((out, attn))

    # structural checks
    assert out.shape == (B, L, D_MODEL)
    assert attn.shape == (B, N_HEADS, L, L)
    assert bool(jnp.allclose(jnp.sum(attn, axis=-1), 1.0, atol=1e-4))

    # numerical check against pure-JAX reference
    ref_out, ref_attn = reference_mha(q, k, v, params)
    assert bool(jnp.allclose(out, ref_out, atol=2e-2, rtol=2e-2))
    assert bool(jnp.allclose(attn, ref_attn, atol=1e-2, rtol=2e-2))

    print("KERNEL_OK")
</pallas_src>

<mosaic_0001>
module attributes {stable_mosaic.version = 11 : i64} {
  func.func @mha_kernel(%arg0: memref<2x8x32xf32, #tpu.memory_space<vmem>>, %arg1: memref<2x8x32xf32, #tpu.memory_space<vmem>>, %arg2: memref<2x8x32xf32, #tpu.memory_space<vmem>>, %arg3: memref<8x32x8xf32, #tpu.memory_space<vmem>>, %arg4: memref<8x32x8xf32, #tpu.memory_space<vmem>>, %arg5: memref<8x32x8xf32, #tpu.memory_space<vmem>>, %arg6: memref<8x8x32xf32, #tpu.memory_space<vmem>>, %arg7: memref<1x32xf32, #tpu.memory_space<vmem>>, %arg8: memref<1x32xf32, #tpu.memory_space<vmem>>, %arg9: memref<2x8x32xf32, #tpu.memory_space<vmem>>, %arg10: memref<8x8x8xf32, #tpu.memory_space<vmem>>) attributes {dimension_semantics = [], scalar_prefetch = 0 : i64, scratch_operands = 0 : i64, tpu.core_type = #tpu.core_type<tc>} {
    %c0 = arith.constant 0 : index
    %c0_0 = arith.constant 0 : index
    %c0_1 = arith.constant 0 : index
    %0 = vector.load %arg0[%c0, %c0_0, %c0_1] : memref<2x8x32xf32, #tpu.memory_space<vmem>>, vector<2x8x32xf32>
    %c0_2 = arith.constant 0 : index
    %c0_3 = arith.constant 0 : index
    %c0_4 = arith.constant 0 : index
    %1 = vector.load %arg1[%c0_2, %c0_3, %c0_4] : memref<2x8x32xf32, #tpu.memory_space<vmem>>, vector<2x8x32xf32>
    %c0_5 = arith.constant 0 : index
    %c0_6 = arith.constant 0 : index
    %c0_7 = arith.constant 0 : index
    %2 = vector.load %arg2[%c0_5, %c0_6, %c0_7] : memref<2x8x32xf32, #tpu.memory_space<vmem>>, vector<2x8x32xf32>
    %3 = vector.shape_cast %0 : vector<2x8x32xf32> to vector<2x1x8x32xf32>
    %4 = vector.shape_cast %3 : vector<2x1x8x32xf32> to vector<2x1x8x32xf32>
    %5 = vector.broadcast %4 : vector<2x1x8x32xf32> to vector<2x4x8x32xf32>
    %6 = vector.shape_cast %5 : vector<2x4x8x32xf32> to vector<8x8x32xf32>
    %c0_8 = arith.constant 0 : index
    %c0_9 = arith.constant 0 : index
    %c0_10 = arith.constant 0 : index
    %7 = vector.load %arg3[%c0_8, %c0_9, %c0_10] : memref<8x32x8xf32, #tpu.memory_space<vmem>>, vector<8x32x8xf32>
    "tpu.trace_start"() <{level = 10 : i32, message = "nld,ndk->nlk"}> : () -> ()
    %cst = arith.constant dense<0.000000e+00> : vector<8x8x8xf32>
    %8 = tpu.matmul %6, %7, %cst {dimension_numbers = #tpu.dot_dimension_numbers<[2], [1], [1], [2], [0, 0, 0, 1, 1, 2], [0], [0]>} : vector<8x8x32xf32>, vector<8x32x8xf32>, vector<8x8x8xf32> -> vector<8x8x8xf32>
    "tpu.trace_stop"() : () -> ()
    %9 = vector.shape_cast %1 : vector<2x8x32xf32> to vector<2x1x8x32xf32>
    %10 = vector.shape_cast %9 : vector<2x1x8x32xf32> to vector<2x1x8x32xf32>
    %11 = vector.broadcast %10 : vector<2x1x8x32xf32> to vector<2x4x8x32xf32>
    %12 = vector.shape_cast %11 : vector<2x4x8x32xf32> to vector<8x8x32xf32>
    %c0_11 = arith.constant 0 : index
    %c0_12 = arith.constant 0 : index
    %c0_13 = arith.constant 0 : index
    %13 = vector.load %arg4[%c0_11, %c0_12, %c0_13] : memref<8x32x8xf32, #tpu.memory_space<vmem>>, vector<8x32x8xf32>
    "tpu.trace_start"() <{level = 10 : i32, message = "nld,ndk->nlk"}> : () -> ()
    %cst_14 = arith.constant dense<0.000000e+00> : vector<8x8x8xf32>
    %14 = tpu.matmul %12, %13, %cst_14 {dimension_numbers = #tpu.dot_dimension_numbers<[2], [1], [1], [2], [0, 0, 0, 1, 1, 2], [0], [0]>} : vector<8x8x32xf32>, vector<8x32x8xf32>, vector<8x8x8xf32> -> vector<8x8x8xf32>
    "tpu.trace_stop"() : () -> ()
    %15 = vector.shape_cast %2 : vector<2x8x32xf32> to vector<2x1x8x32xf32>
    %16 = vector.shape_cast %15 : vector<2x1x8x32xf32> to vector<2x1x8x32xf32>
    %17 = vector.broadcast %16 : vector<2x1x8x32xf32> to vector<2x4x8x32xf32>
    %18 = vector.shape_cast %17 : vector<2x4x8x32xf32> to vector<8x8x32xf32>
    %c0_15 = arith.constant 0 : index
    %c0_16 = arith.constant 0 : index
    %c0_17 = arith.constant 0 : index
    %19 = vector.load %arg5[%c0_15, %c0_16, %c0_17] : memref<8x32x8xf32, #tpu.memory_space<vmem>>, vector<8x32x8xf32>
    "tpu.trace_start"() <{level = 10 : i32, message = "nld,ndk->nlk"}> : () -> ()
    %cst_18 = arith.constant dense<0.000000e+00> : vector<8x8x8xf32>
    %20 = tpu.matmul %18, %19, %cst_18 {dimension_numbers = #tpu.dot_dimension_numbers<[2], [1], [1], [2], [0, 0, 0, 1, 1, 2], [0], [0]>} : vector<8x8x32xf32>, vector<8x32x8xf32>, vector<8x8x8xf32> -> vector<8x8x8xf32>
    "tpu.trace_stop"() : () -> ()
    %cst_19 = arith.constant 0.353553385 : f32
    %21 = vector.broadcast %cst_19 : f32 to vector<8x8x8xf32>
    %22 = arith.mulf %8, %21 : vector<8x8x8xf32>
    "tpu.trace_start"() <{level = 10 : i32, message = "nld,nmd->nlm"}> : () -> ()
    %cst_20 = arith.constant dense<0.000000e+00> : vector<8x8x8xf32>
    %23 = tpu.matmul %22, %14, %cst_20 {dimension_numbers = #tpu.dot_dimension_numbers<[2], [2], [1], [1], [0, 0, 0, 1, 1, 1], [0], [0]>} : vector<8x8x8xf32>, vector<8x8x8xf32>, vector<8x8x8xf32> -> vector<8x8x8xf32>
    "tpu.trace_stop"() : () -> ()
    %cst_21 = arith.constant dense<0xFF800000> : vector<8x8xf32>
    %24 = vector.multi_reduction <maximumf>, %23, %cst_21 [2] : vector<8x8x8xf32> to vector<8x8xf32>
    %25 = vector.shape_cast %24 : vector<8x8xf32> to vector<8x8x1xf32>
    %26 = vector.broadcast %25 : vector<8x8x1xf32> to vector<8x8x8xf32>
    %27 = arith.subf %23, %26 : vector<8x8x8xf32>
    %28 = math.exp %27 : vector<8x8x8xf32>
    %cst_22 = arith.constant dense<0.000000e+00> : vector<8x8xf32>
    %29 = vector.multi_reduction <add>, %28, %cst_22 [2] : vector<8x8x8xf32> to vector<8x8xf32>
    %30 = vector.shape_cast %29 : vector<8x8xf32> to vector<8x8x1xf32>
    %31 = vector.broadcast %30 : vector<8x8x1xf32> to vector<8x8x8xf32>
    %32 = arith.divf %28, %31 : vector<8x8x8xf32>
    %c0_23 = arith.constant 0 : index
    %c0_24 = arith.constant 0 : index
    %c0_25 = arith.constant 0 : index
    %33 = vector.load %arg10[%c0_23, %c0_24, %c0_25] : memref<8x8x8xf32, #tpu.memory_space<vmem>>, vector<8x8x8xf32>
    tpu.vector_store %arg10[%c0_23, %c0_24, %c0_25], %32 {strides = array<i32>} : memref<8x8x8xf32, #tpu.memory_space<vmem>>, vector<8x8x8xf32>,
    "tpu.trace_start"() <{level = 10 : i32, message = "nlm,nmd->nld"}> : () -> ()
    %cst_26 = arith.constant dense<0.000000e+00> : vector<8x8x8xf32>
    %34 = tpu.matmul %32, %20, %cst_26 {dimension_numbers = #tpu.dot_dimension_numbers<[2], [1], [1], [2], [0, 0, 0, 1, 1, 2], [0], [0]>} : vector<8x8x8xf32>, vector<8x8x8xf32>, vector<8x8x8xf32> -> vector<8x8x8xf32>
    "tpu.trace_stop"() : () -> ()
    %c0_27 = arith.constant 0 : index
    %c0_28 = arith.constant 0 : index
    %c0_29 = arith.constant 0 : index
    %35 = vector.load %arg6[%c0_27, %c0_28, %c0_29] : memref<8x8x32xf32, #tpu.memory_space<vmem>>, vector<8x8x32xf32>
    "tpu.trace_start"() <{level = 10 : i32, message = "nld,nde->nle"}> : () -> ()
    %cst_30 = arith.constant dense<0.000000e+00> : vector<8x8x32xf32>
    %36 = tpu.matmul %34, %35, %cst_30 {dimension_numbers = #tpu.dot_dimension_numbers<[2], [1], [1], [2], [0, 0, 0, 1, 1, 2], [0], [0]>} : vector<8x8x8xf32>, vector<8x8x32xf32>, vector<8x8x32xf32> -> vector<8x8x32xf32>
    "tpu.trace_stop"() : () -> ()
    %c0_31 = arith.constant 0 : index
    %c0_32 = arith.constant 0 : index
    %37 = vector.load %arg7[%c0_31, %c0_32] : memref<1x32xf32, #tpu.memory_space<vmem>>, vector<1x32xf32>
    %c0_33 = arith.constant 0 : index
    %c0_34 = arith.constant 0 : index
    %38 = vector.load %arg8[%c0_33, %c0_34] : memref<1x32xf32, #tpu.memory_space<vmem>>, vector<1x32xf32>
    %39 = vector.extract_strided_slice %36 {offsets = [0, 0, 0], sizes = [1, 8, 32], strides = [1, 1, 1]} : vector<8x8x32xf32> to vector<1x8x32xf32>
    %40 = vector.shape_cast %39 : vector<1x8x32xf32> to vector<8x32xf32>
    %41 = vector.extract_strided_slice %36 {offsets = [1, 0, 0], sizes = [1, 8, 32], strides = [1, 1, 1]} : vector<8x8x32xf32> to vector<1x8x32xf32>
    %42 = vector.shape_cast %41 : vector<1x8x32xf32> to vector<8x32xf32>
    %43 = arith.addf %40, %42 : vector<8x32xf32>
    %44 = vector.extract_strided_slice %36 {offsets = [2, 0, 0], sizes = [1, 8, 32], strides = [1, 1, 1]} : vector<8x8x32xf32> to vector<1x8x32xf32>
    %45 = vector.shape_cast %44 : vector<1x8x32xf32> to vector<8x32xf32>
    %46 = arith.addf %43, %45 : vector<8x32xf32>
    %47 = vector.extract_strided_slice %36 {offsets = [3, 0, 0], sizes = [1, 8, 32], strides = [1, 1, 1]} : vector<8x8x32xf32> to vector<1x8x32xf32>
    %48 = vector.shape_cast %47 : vector<1x8x32xf32> to vector<8x32xf32>
    %49 = arith.addf %46, %48 : vector<8x32xf32>
    %50 = vector.extract_strided_slice %0 {offsets = [0, 0, 0], sizes = [1, 8, 32], strides = [1, 1, 1]} : vector<2x8x32xf32> to vector<1x8x32xf32>
    %51 = vector.shape_cast %50 : vector<1x8x32xf32> to vector<8x32xf32>
    %52 = arith.addf %49, %51 : vector<8x32xf32>
    %cst_35 = arith.constant dense<0.000000e+00> : vector<8xf32>
    %53 = vector.multi_reduction <add>, %52, %cst_35 [1] : vector<8x32xf32> to vector<8xf32>
    %54 = vector.shape_cast %53 : vector<8xf32> to vector<8x1xf32>
    %cst_36 = arith.constant 3.200000e+01 : f32
    %55 = vector.broadcast %cst_36 : f32 to vector<8x1xf32>
    %56 = arith.divf %54, %55 : vector<8x1xf32>
    %57 = vector.broadcast %56 : vector<8x1xf32> to vector<8x32xf32>
    %58 = arith.subf %52, %57 : vector<8x32xf32>
    %59 = vector.broadcast %56 : vector<8x1xf32> to vector<8x32xf32>
    %60 = arith.subf %52, %59 : vector<8x32xf32>
    %61 = arith.mulf %58, %60 : vector<8x32xf32>
    %cst_37 = arith.constant dense<0.000000e+00> : vector<8xf32>
    %62 = vector.multi_reduction <add>, %61, %cst_37 [1] : vector<8x32xf32> to vector<8xf32>
    %63 = vector.shape_cast %62 : vector<8xf32> to vector<8x1xf32>
    %cst_38 = arith.constant 3.200000e+01 : f32
    %64 = vector.broadcast %cst_38 : f32 to vector<8x1xf32>
    %65 = arith.divf %63, %64 : vector<8x1xf32>
    %66 = vector.broadcast %56 : vector<8x1xf32> to vector<8x32xf32>
    %67 = arith.subf %52, %66 : vector<8x32xf32>
    %cst_39 = arith.constant 9.99999997E-7 : f32
    %68 = vector.broadcast %cst_39 : f32 to vector<8x1xf32>
    %69 = arith.addf %65, %68 : vector<8x1xf32>
    %70 = math.rsqrt %69 : vector<8x1xf32>
    %71 = vector.broadcast %70 : vector<8x1xf32> to vector<8x32xf32>
    %72 = arith.mulf %67, %71 : vector<8x32xf32>
    %73 = vector.broadcast %37 : vector<1x32xf32> to vector<8x32xf32>
    %74 = arith.mulf %72, %73 : vector<8x32xf32>
    %75 = vector.broadcast %38 : vector<1x32xf32> to vector<8x32xf32>
    %76 = arith.addf %74, %75 : vector<8x32xf32>
    %c0_40 = arith.constant 0 : index
    %c0_41 = arith.constant 0 : index
    %c0_42 = arith.constant 0 : index
    %77 = vector.load %arg9[%c0_40, %c0_41, %c0_42] : memref<2x8x32xf32, #tpu.memory_space<vmem>>, vector<1x8x32xf32>
    %78 = vector.shape_cast %77 : vector<1x8x32xf32> to vector<8x32xf32>
    %79 = vector.shape_cast %76 : vector<8x32xf32> to vector<1x8x32xf32>
    tpu.vector_store %arg9[%c0_40, %c0_41, %c0_42], %79 {strides = array<i32>} : memref<2x8x32xf32, #tpu.memory_space<vmem>>, vector<1x8x32xf32>,
    %80 = vector.extract_strided_slice %36 {offsets = [4, 0, 0], sizes = [1, 8, 32], strides = [1, 1, 1]} : vector<8x8x32xf32> to vector<1x8x32xf32>
    %81 = vector.shape_cast %80 : vector<1x8x32xf32> to vector<8x32xf32>
    %82 = vector.extract_strided_slice %36 {offsets = [5, 0, 0], sizes = [1, 8, 32], strides = [1, 1, 1]} : vector<8x8x32xf32> to vector<1x8x32xf32>
    %83 = vector.shape_cast %82 : vector<1x8x32xf32> to vector<8x32xf32>
    %84 = arith.addf %81, %83 : vector<8x32xf32>
    %85 = vector.extract_strided_slice %36 {offsets = [6, 0, 0], sizes = [1, 8, 32], strides = [1, 1, 1]} : vector<8x8x32xf32> to vector<1x8x32xf32>
    %86 = vector.shape_cast %85 : vector<1x8x32xf32> to vector<8x32xf32>
    %87 = arith.addf %84, %86 : vector<8x32xf32>
    %88 = vector.extract_strided_slice %36 {offsets = [7, 0, 0], sizes = [1, 8, 32], strides = [1, 1, 1]} : vector<8x8x32xf32> to vector<1x8x32xf32>
    %89 = vector.shape_cast %88 : vector<1x8x32xf32> to vector<8x32xf32>
    %90 = arith.addf %87, %89 : vector<8x32xf32>
    %91 = vector.extract_strided_slice %0 {offsets = [1, 0, 0], sizes = [1, 8, 32], strides = [1, 1, 1]} : vector<2x8x32xf32> to vector<1x8x32xf32>
    %92 = vector.shape_cast %91 : vector<1x8x32xf32> to vector<8x32xf32>
    %93 = arith.addf %90, %92 : vector<8x32xf32>
    %cst_43 = arith.constant dense<0.000000e+00> : vector<8xf32>
    %94 = vector.multi_reduction <add>, %93, %cst_43 [1] : vector<8x32xf32> to vector<8xf32>
    %95 = vector.shape_cast %94 : vector<8xf32> to vector<8x1xf32>
    %cst_44 = arith.constant 3.200000e+01 : f32
    %96 = vector.broadcast %cst_44 : f32 to vector<8x1xf32>
    %97 = arith.divf %95, %96 : vector<8x1xf32>
    %98 = vector.broadcast %97 : vector<8x1xf32> to vector<8x32xf32>
    %99 = arith.subf %93, %98 : vector<8x32xf32>
    %100 = vector.broadcast %97 : vector<8x1xf32> to vector<8x32xf32>
    %101 = arith.subf %93, %100 : vector<8x32xf32>
    %102 = arith.mulf %99, %101 : vector<8x32xf32>
    %cst_45 = arith.constant dense<0.000000e+00> : vector<8xf32>
    %103 = vector.multi_reduction <add>, %102, %cst_45 [1] : vector<8x32xf32> to vector<8xf32>
    %104 = vector.shape_cast %103 : vector<8xf32> to vector<8x1xf32>
    %cst_46 = arith.constant 3.200000e+01 : f32
    %105 = vector.broadcast %cst_46 : f32 to vector<8x1xf32>
    %106 = arith.divf %104, %105 : vector<8x1xf32>
    %107 = vector.broadcast %97 : vector<8x1xf32> to vector<8x32xf32>
    %108 = arith.subf %93, %107 : vector<8x32xf32>
    %cst_47 = arith.constant 9.99999997E-7 : f32
    %109 = vector.broadcast %cst_47 : f32 to vector<8x1xf32>
    %110 = arith.addf %106, %109 : vector<8x1xf32>
    %111 = math.rsqrt %110 : vector<8x1xf32>
    %112 = vector.broadcast %111 : vector<8x1xf32> to vector<8x32xf32>
    %113 = arith.mulf %108, %112 : vector<8x32xf32>
    %114 = vector.broadcast %37 : vector<1x32xf32> to vector<8x32xf32>
    %115 = arith.mulf %113, %114 : vector<8x32xf32>
    %116 = vector.broadcast %38 : vector<1x32xf32> to vector<8x32xf32>
    %117 = arith.addf %115, %116 : vector<8x32xf32>
    %c1 = arith.constant 1 : index
    %c0_48 = arith.constant 0 : index
    %c0_49 = arith.constant 0 : index
    %118 = vector.load %arg9[%c1, %c0_48, %c0_49] : memref<2x8x32xf32, #tpu.memory_space<vmem>>, vector<1x8x32xf32>
    %119 = vector.shape_cast %118 : vector<1x8x32xf32> to vector<8x32xf32>
    %120 = vector.shape_cast %117 : vector<8x32xf32> to vector<1x8x32xf32>
    tpu.vector_store %arg9[%c1, %c0_48, %c0_49], %120 {strides = array<i32>} : memref<2x8x32xf32, #tpu.memory_space<vmem>>, vector<1x8x32xf32>,
    return
  }
}

</mosaic_0001>

<llo_original>
// kernel: multi_head_attention.1
$region0: #{multi_head_attention.1}
  #allocation0 [shape = 'u32[]', space=smem, size = 0x4, offset = 0x4, fixed_abs, tag = 'smem constant byte address 0x4 - core index']
  #allocation1 [shape = 'u32[72,128]{1,0:T(1,128)}', space=vmem, size = 0x9000, scoped, tag = 'internal scratch']
  %s0 = inlined_call_operand.vmem [shape: f32[2,8,32], index: 0, kind: input, shape index: {}]
  %s1 = inlined_call_operand.vmem [shape: f32[2,8,32], index: 1, kind: input, shape index: {}]
  %s2 = inlined_call_operand.vmem [shape: f32[2,8,32], index: 2, kind: input, shape index: {}]
  %s3 = inlined_call_operand.vmem [shape: f32[8,32,8], index: 3, kind: input, shape index: {}]
  %s4 = inlined_call_operand.vmem [shape: f32[8,32,8], index: 4, kind: input, shape index: {}]
  %s5 = inlined_call_operand.vmem [shape: f32[8,32,8], index: 5, kind: input, shape index: {}]
  %s6 = inlined_call_operand.vmem [shape: f32[8,8,32], index: 6, kind: input, shape index: {}]
  %s7 = inlined_call_operand.vmem [shape: f32[1,32], index: 7, kind: input, shape index: {}]
  %s8 = inlined_call_operand.vmem [shape: f32[1,32], index: 8, kind: input, shape index: {}]
  %s9 = inlined_call_operand.hbm [shape: f32[2,8,32], index: 9, kind: output, shape index: {0}]
  %s10 = inlined_call_operand.hbm [shape: f32[8,8,8], index: 10, kind: output, shape index: {1}]
  %11 = xla_tuple %s9, %s10
  %s12 = sld [smem:[#allocation0]]
  $region54: #{multi_head_attention.1} parent=0
    _
  %s14 = ssub.s32 1, %s12
  %s15 = scalar_select 0, %s14, %s12
  $region1: #{multi_head_attention.1} parent=0
    #allocation2 [shape = 'u8[8192]{0}', space=vmem, size = 0x2000, scoped, tag = 'output window, operand 0, single buffered']
    #allocation3 [shape = 's32[1]{0}', space=sflag, size = 0x4, scoped, tag = 'scoped memory for multi_head_attention.1']
    #allocation4 [shape = 'u8[32768]{0}', space=vmem, size = 0x8000, scoped, tag = 'output window, operand 1, single buffered']
    #allocation5 [shape = 's32[1]{0}', space=sflag, size = 0x4, scoped, tag = 'scoped memory for multi_head_attention.1']
    %16 = vsyncpa [#allocation3], 0
    %17 = vsyncpa [#allocation5], 0
    // Predicated region
    $region2: #{multi_head_attention.1} parent=1 // pred_check
      _
    $region3: #{multi_head_attention.1} parent=1 // pred_check_branch
      %19 = sbr.rel (0) target = $region5
    $region4: #{multi_head_attention.1} parent=1 // pred_region
      _
    $region5: #{multi_head_attention.1} parent=1 // pred_fallthru
      _
    // Predicated region
    $region6: #{multi_head_attention.1} parent=1 // pred_check
      _
    $region7: #{multi_head_attention.1} parent=1 // pred_check_branch
      %21 = sbr.rel (0) target = $region9
    $region8: #{multi_head_attention.1} parent=1 // pred_region
      _
    $region9: #{multi_head_attention.1} parent=1 // pred_fallthru
      _
    // Predicated region
    $region10: #{multi_head_attention.1} parent=1 // pred_check
      _
    $region11: #{multi_head_attention.1} parent=1 // pred_check_branch
      %23 = sbr.rel (0) target = $region13
    $region12: #{multi_head_attention.1} parent=1 // pred_region
      _
    $region13: #{multi_head_attention.1} parent=1 // pred_fallthru
      _
    // Predicated region
    $region14: #{multi_head_attention.1} parent=1 // pred_check
      _
    $region15: #{multi_head_attention.1} parent=1 // pred_check_branch
      %25 = sbr.rel (0) target = $region17
    $region16: #{multi_head_attention.1} parent=1 // pred_region
      _
    $region17: #{multi_head_attention.1} parent=1 // pred_fallthru
      _
    // Predicated region
    $region18: #{multi_head_attention.1} parent=1 // pred_check
      _
    $region19: #{multi_head_attention.1} parent=1 // pred_check_branch
      %27 = sbr.rel (0) target = $region21
    $region20: #{multi_head_attention.1} parent=1 // pred_region
      _
    $region21: #{multi_head_attention.1} parent=1 // pred_fallthru
      _
    // Predicated region
    $region22: #{multi_head_attention.1} parent=1 // pred_check
      _
    $region23: #{multi_head_attention.1} parent=1 // pred_check_branch
      %29 = sbr.rel (0) target = $region25
    $region24: #{multi_head_attention.1} parent=1 // pred_region
      _
    $region25: #{multi_head_attention.1} parent=1 // pred_fallthru
      _
    // Predicated region
    $region26: #{multi_head_attention.1} parent=1 // pred_check
      _
    $region27: #{multi_head_attention.1} parent=1 // pred_check_branch
      %31 = sbr.rel (0) target = $region29
    $region28: #{multi_head_attention.1} parent=1 // pred_region
      _
    $region29: #{multi_head_attention.1} parent=1 // pred_fallthru
      _
    // Predicated region
    $region30: #{multi_head_attention.1} parent=1 // pred_check
      _
    $region31: #{multi_head_attention.1} parent=1 // pred_check_branch
      %33 = sbr.rel (0) target = $region33
    $region32: #{multi_head_attention.1} parent=1 // pred_region
      _
    $region33: #{multi_head_attention.1} parent=1 // pred_fallthru
      _
    // Predicated region
    $region34: #{multi_head_attention.1} parent=1 // pred_check
      _
    $region35: #{multi_head_attention.1} parent=1 // pred_check_branch
      %35 = sbr.rel (0) target = $region37
    $region36: #{multi_head_attention.1} parent=1 // pred_region
      _
    $region37: #{multi_head_attention.1} parent=1 // pred_fallthru
      _
    %v36 = vld [vmem:[%s0] sm:$0xff]
    %v37 = vld [vmem:[%s0 + $0x8] sm:$0xff]
    %v38 = vld [vmem:[%s1] sm:$0xff]
    %v39 = vld [vmem:[%s1 + $0x8] sm:$0xff]
    %v40 = vld [vmem:[%s2] sm:$0xff]
    %v41 = vld [vmem:[%s2 + $0x8] sm:$0xff]
    %v42 = vld [vmem:[%s3] sm:$0xff]
    %v43 = vld [vmem:[%s3 + $0x8] sm:$0xff]
    %v44 = vld [vmem:[%s3 + $0x10] sm:$0xff]
    %v45 = vld [vmem:[%s3 + $0x18] sm:$0xff]
    %v46 = vld [vmem:[%s3 + $0x20] sm:$0xff]
    %v47 = vld [vmem:[%s3 + $0x28] sm:$0xff]
    %v48 = vld [vmem:[%s3 + $0x30] sm:$0xff]
    %v49 = vld [vmem:[%s3 + $0x38] sm:$0xff]
    %v50 = vld [vmem:[%s3 + $0x40] sm:$0xff]
    %v51 = vld [vmem:[%s3 + $0x48] sm:$0xff]
    %v52 = vld [vmem:[%s3 + $0x50] sm:$0xff]
    %v53 = vld [vmem:[%s3 + $0x58] sm:$0xff]
    %v54 = vld [vmem:[%s3 + $0x60] sm:$0xff]
    %v55 = vld [vmem:[%s3 + $0x68] sm:$0xff]
    %v56 = vld [vmem:[%s3 + $0x70] sm:$0xff]
    %v57 = vld [vmem:[%s3 + $0x78] sm:$0xff]
    %v58 = vld [vmem:[%s3 + $0x80] sm:$0xff]
    %v59 = vld [vmem:[%s3 + $0x88] sm:$0xff]
    %v60 = vld [vmem:[%s3 + $0x90] sm:$0xff]
    %v61 = vld [vmem:[%s3 + $0x98] sm:$0xff]
    %v62 = vld [vmem:[%s3 + $0xa0] sm:$0xff]
    %v63 = vld [vmem:[%s3 + $0xa8] sm:$0xff]
    %v64 = vld [vmem:[%s3 + $0xb0] sm:$0xff]
    %v65 = vld [vmem:[%s3 + $0xb8] sm:$0xff]
    %v66 = vld [vmem:[%s3 + $0xc0] sm:$0xff]
    %v67 = vld [vmem:[%s3 + $0xc8] sm:$0xff]
    %v68 = vld [vmem:[%s3 + $0xd0] sm:$0xff]
    %v69 = vld [vmem:[%s3 + $0xd8] sm:$0xff]
    %v70 = vld [vmem:[%s3 + $0xe0] sm:$0xff]
    %v71 = vld [vmem:[%s3 + $0xe8] sm:$0xff]
    %v72 = vld [vmem:[%s3 + $0xf0] sm:$0xff]
    %v73 = vld [vmem:[%s3 + $0xf8] sm:$0xff]
    %vm74 = vcmask 261120
    %v76 = vsel %vm74, %v36, 0
    %78 = vmatpush.msra.mxu0 0.0
    %79 = vmatpush.msra.mxu0 0.0
    %80 = vmatpush.msra.mxu0 0.0
    %81 = vmatpush.msra.mxu0 0.0
    %82 = vmatpush.msra.mxu0 0.0
    %83 = vmatpush.msra.mxu0 0.0
    %84 = vmatpush.msra.mxu0 0.0
    %85 = vmatpush.msra.mxu0 0.0
    %86 = vmatpush.msra.mxu0 0.0
    %87 = vmatpush.msra.mxu0 0.0
    %88 = vmatpush.msra.mxu0 0.0
    %89 = vmatpush.msra.mxu0 0.0
    %90 = vmatpush.msra.mxu0 %v45
    %91 = vmatpush.msra.mxu0 %v44
    %92 = vmatpush.msra.mxu0 %v43
    %93 = vmatpush.msra.mxu0 %v42
    %94 = vmatmul.f32.gmra.mxu0 %v76
    %v95 = vpop.f32.mrf.mxu0
    %v96 = vadd.f32 0.0, %v95
    %97 = vdwg.mxu0
    %98 = vmatpush.msra.mxu0 0.0
    %99 = vmatpush.msra.mxu0 0.0
    %100 = vmatpush.msra.mxu0 0.0
    %101 = vmatpush.msra.mxu0 0.0
    %102 = vmatpush.msra.mxu0 0.0
    %103 = vmatpush.msra.mxu0 0.0
    %104 = vmatpush.msra.mxu0 0.0
    %105 = vmatpush.msra.mxu0 0.0
    %106 = vmatpush.msra.mxu0 0.0
    %107 = vmatpush.msra.mxu0 0.0
    %108 = vmatpush.msra.mxu0 0.0
    %109 = vmatpush.msra.mxu0 0.0
    %110 = vmatpush.msra.mxu0 %v49
    %111 = vmatpush.msra.mxu0 %v48
    %112 = vmatpush.msra.mxu0 %v47
    %113 = vmatpush.msra.mxu0 %v46
    %114 = vmatmul.f32.gmra.mxu0 %v76
    %v115 = vpop.f32.mrf.mxu0
    %v116 = vadd.f32 0.0, %v115
    %117 = vdwg.mxu0
    %118 = vmatpush.msra.mxu0 0.0
    %119 = vmatpush.msra.mxu0 0.0
    %120 = vmatpush.msra.mxu0 0.0
    %121 = vmatpush.msra.mxu0 0.0
    %122 = vmatpush.msra.mxu0 0.0
    %123 = vmatpush.msra.mxu0 0.0
    %124 = vmatpush.msra.mxu0 0.0
    %125 = vmatpush.msra.mxu0 0.0
    %126 = vmatpush.msra.mxu0 0.0
    %127 = vmatpush.msra.mxu0 0.0
    %128 = vmatpush.msra.mxu0 0.0
    %129 = vmatpush.msra.mxu0 0.0
    %130 = vmatpush.msra.mxu0 %v53
    %131 = vmatpush.msra.mxu0 %v52
    %132 = vmatpush.msra.mxu0 %v51
    %133 = vmatpush.msra.mxu0 %v50
    %134 = vmatmul.f32.gmra.mxu0 %v76
    %v135 = vpop.f32.mrf.mxu0
    %v136 = vadd.f32 0.0, %v135
    %137 = vdwg.mxu0
    %138 = vmatpush.msra.mxu0 0.0
    %139 = vmatpush.msra.mxu0 0.0
    %140 = vmatpush.msra.mxu0 0.0
    %141 = vmatpush.msra.mxu0 0.0
    %142 = vmatpush.msra.mxu0 0.0
    %143 = vmatpush.msra.mxu0 0.0
    %144 = vmatpush.msra.mxu0 0.0
    %145 = vmatpush.msra.mxu0 0.0
    %146 = vmatpush.msra.mxu0 0.0
    %147 = vmatpush.msra.mxu0 0.0
    %148 = vmatpush.msra.mxu0 0.0
    %149 = vmatpush.msra.mxu0 0.0
    %150 = vmatpush.msra.mxu0 %v57
    %151 = vmatpush.msra.mxu0 %v56
    %152 = vmatpush.msra.mxu0 %v55
    %153 = vmatpush.msra.mxu0 %v54
    %154 = vmatmul.f32.gmra.mxu0 %v76
    %v155 = vpop.f32.mrf.mxu0
    %v156 = vadd.f32 0.0, %v155
    %157 = vdwg.mxu0
    %v159 = vsel %vm74, %v37, 0
    %161 = vmatpush.msra.mxu0 0.0
    %162 = vmatpush.msra.mxu0 0.0
    %163 = vmatpush.msra.mxu0 0.0
    %164 = vmatpush.msra.mxu0 0.0
    %165 = vmatpush.msra.mxu0 0.0
    %166 = vmatpush.msra.mxu0 0.0
    %167 = vmatpush.msra.mxu0 0.0
    %168 = vmatpush.msra.mxu0 0.0
    %169 = vmatpush.msra.mxu0 0.0
    %170 = vmatpush.msra.mxu0 0.0
    %171 = vmatpush.msra.mxu0 0.0
    %172 = vmatpush.msra.mxu0 0.0
    %173 = vmatpush.msra.mxu0 %v61
    %174 = vmatpush.msra.mxu0 %v60
    %175 = vmatpush.msra.mxu0 %v59
    %176 = vmatpush.msra.mxu0 %v58
    %177 = vmatmul.f32.gmra.mxu0 %v159
    %v178 = vpop.f32.mrf.mxu0
    %v179 = vadd.f32 0.0, %v178
    %180 = vdwg.mxu0
    %181 = vmatpush.msra.mxu0 0.0
    %182 = vmatpush.msra.mxu0 0.0
    %183 = vmatpush.msra.mxu0 0.0
    %184 = vmatpush.msra.mxu0 0.0
    %185 = vmatpush.msra.mxu0 0.0
    %186 = vmatpush.msra.mxu0 0.0
    %187 = vmatpush.msra.mxu0 0.0
    %188 = vmatpush.msra.mxu0 0.0
    %189 = vmatpush.msra.mxu0 0.0
    %190 = vmatpush.msra.mxu0 0.0
    %191 = vmatpush.msra.mxu0 0.0
    %192 = vmatpush.msra.mxu0 0.0
    %193 = vmatpush.msra.mxu0 %v65
    %194 = vmatpush.msra.mxu0 %v64
    %195 = vmatpush.msra.mxu0 %v63
    %196 = vmatpush.msra.mxu0 %v62
    %197 = vmatmul.f32.gmra.mxu0 %v159
    %v198 = vpop.f32.mrf.mxu0
    %v199 = vadd.f32 0.0, %v198
    %200 = vdwg.mxu0
    %201 = vmatpush.msra.mxu0 0.0
    %202 = vmatpush.msra.mxu0 0.0
    %203 = vmatpush.msra.mxu0 0.0
    %204 = vmatpush.msra.mxu0 0.0
    %205 = vmatpush.msra.mxu0 0.0
    %206 = vmatpush.msra.mxu0 0.0
    %207 = vmatpush.msra.mxu0 0.0
    %208 = vmatpush.msra.mxu0 0.0
    %209 = vmatpush.msra.mxu0 0.0
    %210 = vmatpush.msra.mxu0 0.0
    %211 = vmatpush.msra.mxu0 0.0
    %212 = vmatpush.msra.mxu0 0.0
    %213 = vmatpush.msra.mxu0 %v69
    %214 = vmatpush.msra.mxu0 %v68
    %215 = vmatpush.msra.mxu0 %v67
    %216 = vmatpush.msra.mxu0 %v66
    %217 = vmatmul.f32.gmra.mxu0 %v159
    %v218 = vpop.f32.mrf.mxu0
    %v219 = vadd.f32 0.0, %v218
    %220 = vdwg.mxu0
    %221 = vmatpush.msra.mxu0 0.0
    %222 = vmatpush.msra.mxu0 0.0
    %223 = vmatpush.msra.mxu0 0.0
    %224 = vmatpush.msra.mxu0 0.0
    %225 = vmatpush.msra.mxu0 0.0
    %226 = vmatpush.msra.mxu0 0.0
    %227 = vmatpush.msra.mxu0 0.0
    %228 = vmatpush.msra.mxu0 0.0
    %229 = vmatpush.msra.mxu0 0.0
    %230 = vmatpush.msra.mxu0 0.0
    %231 = vmatpush.msra.mxu0 0.0
    %232 = vmatpush.msra.mxu0 0.0
    %233 = vmatpush.msra.mxu0 %v73
    %234 = vmatpush.msra.mxu0 %v72
    %235 = vmatpush.msra.mxu0 %v71
    %236 = vmatpush.msra.mxu0 %v70
    %237 = vmatmul.f32.gmra.mxu0 %v159
    %v238 = vpop.f32.mrf.mxu0
    %v239 = vadd.f32 0.0, %v238
    %240 = vdwg.mxu0
    %v241 = vld [vmem:[%s4] sm:$0xff]
    %v242 = vld [vmem:[%s4 + $0x8] sm:$0xff]
    %v243 = vld [vmem:[%s4 + $0x10] sm:$0xff]
    %v244 = vld [vmem:[%s4 + $0x18] sm:$0xff]
    %v245 = vld [vmem:[%s4 + $0x20] sm:$0xff]
    %v246 = vld [vmem:[%s4 + $0x28] sm:$0xff]
    %v247 = vld [vmem:[%s4 + $0x30] sm:$0xff]
    %v248 = vld [vmem:[%s4 + $0x38] sm:$0xff]
    %v249 = vld [vmem:[%s4 + $0x40] sm:$0xff]
    %v250 = vld [vmem:[%s4 + $0x48] sm:$0xff]
    %v251 = vld [vmem:[%s4 + $0x50] sm:$0xff]
    %v252 = vld [vmem:[%s4 + $0x58] sm:$0xff]
    %v253 = vld [vmem:[%s4 + $0x60] sm:$0xff]
    %v254 = vld [vmem:[%s4 + $0x68] sm:$0xff]
    %v255 = vld [vmem:[%s4 + $0x70] sm:$0xff]
    %v256 = vld [vmem:[%s4 + $0x78] sm:$0xff]
    %v257 = vld [vmem:[%s4 + $0x80] sm:$0xff]
    %v258 = vld [vmem:[%s4 + $0x88] sm:$0xff]
    %v259 = vld [vmem:[%s4 + $0x90] sm:$0xff]
    %v260 = vld [vmem:[%s4 + $0x98] sm:$0xff]
    %v261 = vld [vmem:[%s4 + $0xa0] sm:$0xff]
    %v262 = vld [vmem:[%s4 + $0xa8] sm:$0xff]
    %v263 = vld [vmem:[%s4 + $0xb0] sm:$0xff]
    %v264 = vld [vmem:[%s4 + $0xb8] sm:$0xff]
    %v265 = vld [vmem:[%s4 + $0xc0] sm:$0xff]
    %v266 = vld [vmem:[%s4 + $0xc8] sm:$0xff]
    %v267 = vld [vmem:[%s4 + $0xd0] sm:$0xff]
    %v268 = vld [vmem:[%s4 + $0xd8] sm:$0xff]
    %v269 = vld [vmem:[%s4 + $0xe0] sm:$0xff]
    %v270 = vld [vmem:[%s4 + $0xe8] sm:$0xff]
    %v271 = vld [vmem:[%s4 + $0xf0] sm:$0xff]
    %v272 = vld [vmem:[%s4 + $0xf8] sm:$0xff]
    %v274 = vsel %vm74, %v38, 0
    %276 = vmatpush.msra.mxu0 0.0
    %277 = vmatpush.msra.mxu0 0.0
    %278 = vmatpush.msra.mxu0 0.0
    %279 = vmatpush.msra.mxu0 0.0
    %280 = vmatpush.msra.mxu0 0.0
    %281 = vmatpush.msra.mxu0 0.0
    %282 = vmatpush.msra.mxu0 0.0
    %283 = vmatpush.msra.mxu0 0.0
    %284 = vmatpush.msra.mxu0 0.0
    %285 = vmatpush.msra.mxu0 0.0
    %286 = vmatpush.msra.mxu0 0.0
    %287 = vmatpush.msra.mxu0 0.0
    %288 = vmatpush.msra.mxu0 %v244
    %289 = vmatpush.msra.mxu0 %v243
    %290 = vmatpush.msra.mxu0 %v242
    %291 = vmatpush.msra.mxu0 %v241
    %292 = vmatmul.f32.gmra.mxu0 %v274
    %v293 = vpop.f32.mrf.mxu0
    %v294 = vadd.f32 0.0, %v293
    %295 = vdwg.mxu0
    %296 = vmatpush.msra.mxu0 0.0
    %297 = vmatpush.msra.mxu0 0.0
    %298 = vmatpush.msra.mxu0 0.0
    %299 = vmatpush.msra.mxu0 0.0
    %300 = vmatpush.msra.mxu0 0.0
    %301 = vmatpush.msra.mxu0 0.0
    %302 = vmatpush.msra.mxu0 0.0
    %303 = vmatpush.msra.mxu0 0.0
    %304 = vmatpush.msra.mxu0 0.0
    %305 = vmatpush.msra.mxu0 0.0
    %306 = vmatpush.msra.mxu0 0.0
    %307 = vmatpush.msra.mxu0 0.0
    %308 = vmatpush.msra.mxu0 %v248
    %309 = vmatpush.msra.mxu0 %v247
    %310 = vmatpush.msra.mxu0 %v246
    %311 = vmatpush.msra.mxu0 %v245
    %312 = vmatmul.f32.gmra.mxu0 %v274
    %v313 = vpop.f32.mrf.mxu0
    %v314 = vadd.f32 0.0, %v313
    %315 = vdwg.mxu0
    %316 = vmatpush.msra.mxu0 0.0
    %317 = vmatpush.msra.mxu0 0.0
    %318 = vmatpush.msra.mxu0 0.0
    %319 = vmatpush.msra.mxu0 0.0
    %320 = vmatpush.msra.mxu0 0.0
    %321 = vmatpush.msra.mxu0 0.0
    %322 = vmatpush.msra.mxu0 0.0
    %323 = vmatpush.msra.mxu0 0.0
    %324 = vmatpush.msra.mxu0 0.0
    %325 = vmatpush.msra.mxu0 0.0
    %326 = vmatpush.msra.mxu0 0.0
    %327 = vmatpush.msra.mxu0 0.0
    %328 = vmatpush.msra.mxu0 %v252
    %329 = vmatpush.msra.mxu0 %v251
    %330 = vmatpush.msra.mxu0 %v250
    %331 = vmatpush.msra.mxu0 %v249
    %332 = vmatmul.f32.gmra.mxu0 %v274
    %v333 = vpop.f32.mrf.mxu0
    %v334 = vadd.f32 0.0, %v333
    %335 = vdwg.mxu0
    %336 = vmatpush.msra.mxu0 0.0
    %337 = vmatpush.msra.mxu0 0.0
    %338 = vmatpush.msra.mxu0 0.0
    %339 = vmatpush.msra.mxu0 0.0
    %340 = vmatpush.msra.mxu0 0.0
    %341 = vmatpush.msra.mxu0 0.0
    %342 = vmatpush.msra.mxu0 0.0
    %343 = vmatpush.msra.mxu0 0.0
    %344 = vmatpush.msra.mxu0 0.0
    %345 = vmatpush.msra.mxu0 0.0
    %346 = vmatpush.msra.mxu0 0.0
    %347 = vmatpush.msra.mxu0 0.0
    %348 = vmatpush.msra.mxu0 %v256
    %349 = vmatpush.msra.mxu0 %v255
    %350 = vmatpush.msra.mxu0 %v254
    %351 = vmatpush.msra.mxu0 %v253
    %352 = vmatmul.f32.gmra.mxu0 %v274
    %v353 = vpop.f32.mrf.mxu0
    %v354 = vadd.f32 0.0, %v353
    %355 = vdwg.mxu0
    %v357 = vsel %vm74, %v39, 0
    %359 = vmatpush.msra.mxu0 0.0
    %360 = vmatpush.msra.mxu0 0.0
    %361 = vmatpush.msra.mxu0 0.0
    %362 = vmatpush.msra.mxu0 0.0
    %363 = vmatpush.msra.mxu0 0.0
    %364 = vmatpush.msra.mxu0 0.0
    %365 = vmatpush.msra.mxu0 0.0
    %366 = vmatpush.msra.mxu0 0.0
    %367 = vmatpush.msra.mxu0 0.0
    %368 = vmatpush.msra.mxu0 0.0
    %369 = vmatpush.msra.mxu0 0.0
    %370 = vmatpush.msra.mxu0 0.0
    %371 = vmatpush.msra.mxu0 %v260
    %372 = vmatpush.msra.mxu0 %v259
    %373 = vmatpush.msra.mxu0 %v258
    %374 = vmatpush.msra.mxu0 %v257
    %375 = vmatmul.f32.gmra.mxu0 %v357
    %v376 = vpop.f32.mrf.mxu0
    %v377 = vadd.f32 0.0, %v376
    %378 = vdwg.mxu0
    %379 = vmatpush.msra.mxu0 0.0
    %380 = vmatpush.msra.mxu0 0.0
    %381 = vmatpush.msra.mxu0 0.0
    %382 = vmatpush.msra.mxu0 0.0
    %383 = vmatpush.msra.mxu0 0.0
    %384 = vmatpush.msra.mxu0 0.0
    %385 = vmatpush.msra.mxu0 0.0
    %386 = vmatpush.msra.mxu0 0.0
    %387 = vmatpush.msra.mxu0 0.0
    %388 = vmatpush.msra.mxu0 0.0
    %389 = vmatpush.msra.mxu0 0.0
    %390 = vmatpush.msra.mxu0 0.0
    %391 = vmatpush.msra.mxu0 %v264
    %392 = vmatpush.msra.mxu0 %v263
    %393 = vmatpush.msra.mxu0 %v262
    %394 = vmatpush.msra.mxu0 %v261
    %395 = vmatmul.f32.gmra.mxu0 %v357
    %v396 = vpop.f32.mrf.mxu0
    %v397 = vadd.f32 0.0, %v396
    %398 = vdwg.mxu0
    %399 = vmatpush.msra.mxu0 0.0
    %400 = vmatpush.msra.mxu0 0.0
    %401 = vmatpush.msra.mxu0 0.0
    %402 = vmatpush.msra.mxu0 0.0
    %403 = vmatpush.msra.mxu0 0.0
    %404 = vmatpush.msra.mxu0 0.0
    %405 = vmatpush.msra.mxu0 0.0
    %406 = vmatpush.msra.mxu0 0.0
    %407 = vmatpush.msra.mxu0 0.0
    %408 = vmatpush.msra.mxu0 0.0
    %409 = vmatpush.msra.mxu0 0.0
    %410 = vmatpush.msra.mxu0 0.0
    %411 = vmatpush.msra.mxu0 %v268
    %412 = vmatpush.msra.mxu0 %v267
    %413 = vmatpush.msra.mxu0 %v266
    %414 = vmatpush.msra.mxu0 %v265
    %415 = vmatmul.f32.gmra.mxu0 %v357
    %v416 = vpop.f32.mrf.mxu0
    %v417 = vadd.f32 0.0, %v416
    %418 = vdwg.mxu0
    %419 = vmatpush.msra.mxu0 0.0
    %420 = vmatpush.msra.mxu0 0.0
    %421 = vmatpush.msra.mxu0 0.0
    %422 = vmatpush.msra.mxu0 0.0
    %423 = vmatpush.msra.mxu0 0.0
    %424 = vmatpush.msra.mxu0 0.0
    %425 = vmatpush.msra.mxu0 0.0
    %426 = vmatpush.msra.mxu0 0.0
    %427 = vmatpush.msra.mxu0 0.0
    %428 = vmatpush.msra.mxu0 0.0
    %429 = vmatpush.msra.mxu0 0.0
    %430 = vmatpush.msra.mxu0 0.0
    %431 = vmatpush.msra.mxu0 %v272
    %432 = vmatpush.msra.mxu0 %v271
    %433 = vmatpush.msra.mxu0 %v270
    %434 = vmatpush.msra.mxu0 %v269
    %435 = vmatmul.f32.gmra.mxu0 %v357
    %v436 = vpop.f32.mrf.mxu0
    %v437 = vadd.f32 0.0, %v436
    %438 = vdwg.mxu0
    %v439 = vld [vmem:[%s5] sm:$0xff]
    %v440 = vld [vmem:[%s5 + $0x8] sm:$0xff]
    %v441 = vld [vmem:[%s5 + $0x10] sm:$0xff]
    %v442 = vld [vmem:[%s5 + $0x18] sm:$0xff]
    %v443 = vld [vmem:[%s5 + $0x20] sm:$0xff]
    %v444 = vld [vmem:[%s5 + $0x28] sm:$0xff]
    %v445 = vld [vmem:[%s5 + $0x30] sm:$0xff]
    %v446 = vld [vmem:[%s5 + $0x38] sm:$0xff]
    %v447 = vld [vmem:[%s5 + $0x40] sm:$0xff]
    %v448 = vld [vmem:[%s5 + $0x48] sm:$0xff]
    %v449 = vld [vmem:[%s5 + $0x50] sm:$0xff]
    %v450 = vld [vmem:[%s5 + $0x58] sm:$0xff]
    %v451 = vld [vmem:[%s5 + $0x60] sm:$0xff]
    %v452 = vld [vmem:[%s5 + $0x68] sm:$0xff]
    %v453 = vld [vmem:[%s5 + $0x70] sm:$0xff]
    %v454 = vld [vmem:[%s5 + $0x78] sm:$0xff]
    %v455 = vld [vmem:[%s5 + $0x80] sm:$0xff]
    %v456 = vld [vmem:[%s5 + $0x88] sm:$0xff]
    %v457 = vld [vmem:[%s5 + $0x90] sm:$0xff]
    %v458 = vld [vmem:[%s5 + $0x98] sm:$0xff]
    %v459 = vld [vmem:[%s5 + $0xa0] sm:$0xff]
    %v460 = vld [vmem:[%s5 + $0xa8] sm:$0xff]
    %v461 = vld [vmem:[%s5 + $0xb0] sm:$0xff]
    %v462 = vld [vmem:[%s5 + $0xb8] sm:$0xff]
    %v463 = vld [vmem:[%s5 + $0xc0] sm:$0xff]
    %v464 = vld [vmem:[%s5 + $0xc8] sm:$0xff]
    %v465 = vld [vmem:[%s5 + $0xd0] sm:$0xff]
    %v466 = vld [vmem:[%s5 + $0xd8] sm:$0xff]
    %v467 = vld [vmem:[%s5 + $0xe0] sm:$0xff]
    %v468 = vld [vmem:[%s5 + $0xe8] sm:$0xff]
    %v469 = vld [vmem:[%s5 + $0xf0] sm:$0xff]
    %v470 = vld [vmem:[%s5 + $0xf8] sm:$0xff]
    %v472 = vsel %vm74, %v40, 0
    %474 = vmatpush.msra.mxu0 0.0
    %475 = vmatpush.msra.mxu0 0.0
    %476 = vmatpush.msra.mxu0 0.0
    %477 = vmatpush.msra.mxu0 0.0
    %478 = vmatpush.msra.mxu0 0.0
    %479 = vmatpush.msra.mxu0 0.0
    %480 = vmatpush.msra.mxu0 0.0
    %481 = vmatpush.msra.mxu0 0.0
    %482 = vmatpush.msra.mxu0 0.0
    %483 = vmatpush.msra.mxu0 0.0
    %484 = vmatpush.msra.mxu0 0.0
    %485 = vmatpush.msra.mxu0 0.0
    %486 = vmatpush.msra.mxu0 %v442
    %487 = vmatpush.msra.mxu0 %v441
    %488 = vmatpush.msra.mxu0 %v440
    %489 = vmatpush.msra.mxu0 %v439
    %490 = vmatmul.f32.gmra.mxu0 %v472
    %v491 = vpop.f32.mrf.mxu0
    %v492 = vadd.f32 0.0, %v491
    %493 = vdwg.mxu0
    %494 = vmatpush.msra.mxu0 0.0
    %495 = vmatpush.msra.mxu0 0.0
    %496 = vmatpush.msra.mxu0 0.0
    %497 = vmatpush.msra.mxu0 0.0
    %498 = vmatpush.msra.mxu0 0.0
    %499 = vmatpush.msra.mxu0 0.0
    %500 = vmatpush.msra.mxu0 0.0
    %501 = vmatpush.msra.mxu0 0.0
    %502 = vmatpush.msra.mxu0 0.0
    %503 = vmatpush.msra.mxu0 0.0
    %504 = vmatpush.msra.mxu0 0.0
    %505 = vmatpush.msra.mxu0 0.0
    %506 = vmatpush.msra.mxu0 %v446
    %507 = vmatpush.msra.mxu0 %v445
    %508 = vmatpush.msra.mxu0 %v444
    %509 = vmatpush.msra.mxu0 %v443
    %510 = vmatmul.f32.gmra.mxu0 %v472
    %v511 = vpop.f32.mrf.mxu0
    %v512 = vadd.f32 0.0, %v511
    %513 = vdwg.mxu0
    %514 = vmatpush.msra.mxu0 0.0
    %515 = vmatpush.msra.mxu0 0.0
    %516 = vmatpush.msra.mxu0 0.0
    %517 = vmatpush.msra.mxu0 0.0
    %518 = vmatpush.msra.mxu0 0.0
    %519 = vmatpush.msra.mxu0 0.0
    %520 = vmatpush.msra.mxu0 0.0
    %521 = vmatpush.msra.mxu0 0.0
    %522 = vmatpush.msra.mxu0 0.0
    %523 = vmatpush.msra.mxu0 0.0
    %524 = vmatpush.msra.mxu0 0.0
    %525 = vmatpush.msra.mxu0 0.0
    %526 = vmatpush.msra.mxu0 %v450
    %527 = vmatpush.msra.mxu0 %v449
    %528 = vmatpush.msra.mxu0 %v448
    %529 = vmatpush.msra.mxu0 %v447
    %530 = vmatmul.f32.gmra.mxu0 %v472
    %v531 = vpop.f32.mrf.mxu0
    %v532 = vadd.f32 0.0, %v531
    %533 = vdwg.mxu0
    %534 = vmatpush.msra.mxu0 0.0
    %535 = vmatpush.msra.mxu0 0.0
    %536 = vmatpush.msra.mxu0 0.0
    %537 = vmatpush.msra.mxu0 0.0
    %538 = vmatpush.msra.mxu0 0.0
    %539 = vmatpush.msra.mxu0 0.0
    %540 = vmatpush.msra.mxu0 0.0
    %541 = vmatpush.msra.mxu0 0.0
    %542 = vmatpush.msra.mxu0 0.0
    %543 = vmatpush.msra.mxu0 0.0
    %544 = vmatpush.msra.mxu0 0.0
    %545 = vmatpush.msra.mxu0 0.0
    %546 = vmatpush.msra.mxu0 %v454
    %547 = vmatpush.msra.mxu0 %v453
    %548 = vmatpush.msra.mxu0 %v452
    %549 = vmatpush.msra.mxu0 %v451
    %550 = vmatmul.f32.gmra.mxu0 %v472
    %v551 = vpop.f32.mrf.mxu0
    %v552 = vadd.f32 0.0, %v551
    %553 = vdwg.mxu0
    %v555 = vsel %vm74, %v41, 0
    %557 = vmatpush.msra.mxu0 0.0
    %558 = vmatpush.msra.mxu0 0.0
    %559 = vmatpush.msra.mxu0 0.0
    %560 = vmatpush.msra.mxu0 0.0
    %561 = vmatpush.msra.mxu0 0.0
    %562 = vmatpush.msra.mxu0 0.0
    %563 = vmatpush.msra.mxu0 0.0
    %564 = vmatpush.msra.mxu0 0.0
    %565 = vmatpush.msra.mxu0 0.0
    %566 = vmatpush.msra.mxu0 0.0
    %567 = vmatpush.msra.mxu0 0.0
    %568 = vmatpush.msra.mxu0 0.0
    %569 = vmatpush.msra.mxu0 %v458
    %570 = vmatpush.msra.mxu0 %v457
    %571 = vmatpush.msra.mxu0 %v456
    %572 = vmatpush.msra.mxu0 %v455
    %573 = vmatmul.f32.gmra.mxu0 %v555
    %v574 = vpop.f32.mrf.mxu0
    %v575 = vadd.f32 0.0, %v574
    %576 = vdwg.mxu0
    %577 = vmatpush.msra.mxu0 0.0
    %578 = vmatpush.msra.mxu0 0.0
    %579 = vmatpush.msra.mxu0 0.0
    %580 = vmatpush.msra.mxu0 0.0
    %581 = vmatpush.msra.mxu0 0.0
    %582 = vmatpush.msra.mxu0 0.0
    %583 = vmatpush.msra.mxu0 0.0
    %584 = vmatpush.msra.mxu0 0.0
    %585 = vmatpush.msra.mxu0 0.0
    %586 = vmatpush.msra.mxu0 0.0
    %587 = vmatpush.msra.mxu0 0.0
    %588 = vmatpush.msra.mxu0 0.0
    %589 = vmatpush.msra.mxu0 %v462
    %590 = vmatpush.msra.mxu0 %v461
    %591 = vmatpush.msra.mxu0 %v460
    %592 = vmatpush.msra.mxu0 %v459
    %593 = vmatmul.f32.gmra.mxu0 %v555
    %v594 = vpop.f32.mrf.mxu0
    %v595 = vadd.f32 0.0, %v594
    %596 = vdwg.mxu0
    %597 = vmatpush.msra.mxu0 0.0
    %598 = vmatpush.msra.mxu0 0.0
    %599 = vmatpush.msra.mxu0 0.0
    %600 = vmatpush.msra.mxu0 0.0
    %601 = vmatpush.msra.mxu0 0.0
    %602 = vmatpush.msra.mxu0 0.0
    %603 = vmatpush.msra.mxu0 0.0
    %604 = vmatpush.msra.mxu0 0.0
    %605 = vmatpush.msra.mxu0 0.0
    %606 = vmatpush.msra.mxu0 0.0
    %607 = vmatpush.msra.mxu0 0.0
    %608 = vmatpush.msra.mxu0 0.0
    %609 = vmatpush.msra.mxu0 %v466
    %610 = vmatpush.msra.mxu0 %v465
    %611 = vmatpush.msra.mxu0 %v464
    %612 = vmatpush.msra.mxu0 %v463
    %613 = vmatmul.f32.gmra.mxu0 %v555
    %v614 = vpop.f32.mrf.mxu0
    %v615 = vadd.f32 0.0, %v614
    %616 = vdwg.mxu0
    %617 = vmatpush.msra.mxu0 0.0
    %618 = vmatpush.msra.mxu0 0.0
    %619 = vmatpush.msra.mxu0 0.0
    %620 = vmatpush.msra.mxu0 0.0
    %621 = vmatpush.msra.mxu0 0.0
    %622 = vmatpush.msra.mxu0 0.0
    %623 = vmatpush.msra.mxu0 0.0
    %624 = vmatpush.msra.mxu0 0.0
    %625 = vmatpush.msra.mxu0 0.0
    %626 = vmatpush.msra.mxu0 0.0
    %627 = vmatpush.msra.mxu0 0.0
    %628 = vmatpush.msra.mxu0 0.0
    %629 = vmatpush.msra.mxu0 %v470
    %630 = vmatpush.msra.mxu0 %v469
    %631 = vmatpush.msra.mxu0 %v468
    %632 = vmatpush.msra.mxu0 %v467
    %633 = vmatmul.f32.gmra.mxu0 %v555
    %v634 = vpop.f32.mrf.mxu0
    %v635 = vadd.f32 0.0, %v634
    %636 = vdwg.mxu0
    %v637 = vmul.f32 %v96, 0.35355338
    %v638 = vmul.f32 %v116, 0.35355338
    %v639 = vmul.f32 %v136, 0.35355338
    %v640 = vmul.f32 %v156, 0.35355338
    %v641 = vmul.f32 %v179, 0.35355338
    %v642 = vmul.f32 %v199, 0.35355338
    %v643 = vmul.f32 %v219, 0.35355338
    %v644 = vmul.f32 %v239, 0.35355338
    %vm645 = vcmask 64512
    %v647 = vsel %vm645, %v637, 0
    %v650 = vsel %vm645, %v294, 0
    %652 = vmatpush.xpose.msra.mxu0 0.0
    %653 = vmatpush.xpose.msra.mxu0 0.0
    %654 = vmatpush.xpose.msra.mxu0 0.0
    %655 = vmatpush.xpose.msra.mxu0 0.0
    %656 = vmatpush.xpose.msra.mxu0 0.0
    %657 = vmatpush.xpose.msra.mxu0 0.0
    %658 = vmatpush.xpose.msra.mxu0 0.0
    %659 = vmatpush.xpose.msra.mxu0 0.0
    %660 = vmatpush.xpose.msra.mxu0 0.0
    %661 = vmatpush.xpose.msra.mxu0 0.0
    %662 = vmatpush.xpose.msra.mxu0 0.0
    %663 = vmatpush.xpose.msra.mxu0 0.0
    %664 = vmatpush.xpose.msra.mxu0 0.0
    %665 = vmatpush.xpose.msra.mxu0 0.0
    %666 = vmatpush.xpose.msra.mxu0 0.0
    %667 = vmatpush.xpose.msra.mxu0 %v650
    %668 = vmatmul.f32.gmra.mxu0 %v647
    %v669 = vpop.f32.mrf.mxu0
    %v670 = vadd.f32 0.0, %v669
    %671 = vdwg.mxu0
    %v673 = vsel %vm645, %v638, 0
    %v676 = vsel %vm645, %v314, 0
    %678 = vmatpush.xpose.msra.mxu0 0.0
    %679 = vmatpush.xpose.msra.mxu0 0.0
    %680 = vmatpush.xpose.msra.mxu0 0.0
    %681 = vmatpush.xpose.msra.mxu0 0.0
    %682 = vmatpush.xpose.msra.mxu0 0.0
    %683 = vmatpush.xpose.msra.mxu0 0.0
    %684 = vmatpush.xpose.msra.mxu0 0.0
    %685 = vmatpush.xpose.msra.mxu0 0.0
    %686 = vmatpush.xpose.msra.mxu0 0.0
    %687 = vmatpush.xpose.msra.mxu0 0.0
    %688 = vmatpush.xpose.msra.mxu0 0.0
    %689 = vmatpush.xpose.msra.mxu0 0.0
    %690 = vmatpush.xpose.msra.mxu0 0.0
    %691 = vmatpush.xpose.msra.mxu0 0.0
    %692 = vmatpush.xpose.msra.mxu0 0.0
    %693 = vmatpush.xpose.msra.mxu0 %v676
    %694 = vmatmul.f32.gmra.mxu0 %v673
    %v695 = vpop.f32.mrf.mxu0
    %v696 = vadd.f32 0.0, %v695
    %697 = vdwg.mxu0
    %v699 = vsel %vm645, %v639, 0
    %v702 = vsel %vm645, %v334, 0
    %704 = vmatpush.xpose.msra.mxu0 0.0
    %705 = vmatpush.xpose.msra.mxu0 0.0
    %706 = vmatpush.xpose.msra.mxu0 0.0
    %707 = vmatpush.xpose.msra.mxu0 0.0
    %708 = vmatpush.xpose.msra.mxu0 0.0
    %709 = vmatpush.xpose.msra.mxu0 0.0
    %710 = vmatpush.xpose.msra.mxu0 0.0
    %711 = vmatpush.xpose.msra.mxu0 0.0
    %712 = vmatpush.xpose.msra.mxu0 0.0
    %713 = vmatpush.xpose.msra.mxu0 0.0
    %714 = vmatpush.xpose.msra.mxu0 0.0
    %715 = vmatpush.xpose.msra.mxu0 0.0
    %716 = vmatpush.xpose.msra.mxu0 0.0
    %717 = vmatpush.xpose.msra.mxu0 0.0
    %718 = vmatpush.xpose.msra.mxu0 0.0
    %719 = vmatpush.xpose.msra.mxu0 %v702
    %720 = vmatmul.f32.gmra.mxu0 %v699
    %v721 = vpop.f32.mrf.mxu0
    %v722 = vadd.f32 0.0, %v721
    %723 = vdwg.mxu0
    %v725 = vsel %vm645, %v640, 0
    %v728 = vsel %vm645, %v354, 0
    %730 = vmatpush.xpose.msra.mxu0 0.0
    %731 = vmatpush.xpose.msra.mxu0 0.0
    %732 = vmatpush.xpose.msra.mxu0 0.0
    %733 = vmatpush.xpose.msra.mxu0 0.0
    %734 = vmatpush.xpose.msra.mxu0 0.0
    %735 = vmatpush.xpose.msra.mxu0 0.0
    %736 = vmatpush.xpose.msra.mxu0 0.0
    %737 = vmatpush.xpose.msra.mxu0 0.0
    %738 = vmatpush.xpose.msra.mxu0 0.0
    %739 = vmatpush.xpose.msra.mxu0 0.0
    %740 = vmatpush.xpose.msra.mxu0 0.0
    %741 = vmatpush.xpose.msra.mxu0 0.0
    %742 = vmatpush.xpose.msra.mxu0 0.0
    %743 = vmatpush.xpose.msra.mxu0 0.0
    %744 = vmatpush.xpose.msra.mxu0 0.0
    %745 = vmatpush.xpose.msra.mxu0 %v728
    %746 = vmatmul.f32.gmra.mxu0 %v725
    %v747 = vpop.f32.mrf.mxu0
    %v748 = vadd.f32 0.0, %v747
    %749 = vdwg.mxu0
    %v751 = vsel %vm645, %v641, 0
    %v754 = vsel %vm645, %v377, 0
    %756 = vmatpush.xpose.msra.mxu0 0.0
    %757 = vmatpush.xpose.msra.mxu0 0.0
    %758 = vmatpush.xpose.msra.mxu0 0.0
    %759 = vmatpush.xpose.msra.mxu0 0.0
    %760 = vmatpush.xpose.msra.mxu0 0.0
    %761 = vmatpush.xpose.msra.mxu0 0.0
    %762 = vmatpush.xpose.msra.mxu0 0.0
    %763 = vmatpush.xpose.msra.mxu0 0.0
    %764 = vmatpush.xpose.msra.mxu0 0.0
    %765 = vmatpush.xpose.msra.mxu0 0.0
    %766 = vmatpush.xpose.msra.mxu0 0.0
    %767 = vmatpush.xpose.msra.mxu0 0.0
    %768 = vmatpush.xpose.msra.mxu0 0.0
    %769 = vmatpush.xpose.msra.mxu0 0.0
    %770 = vmatpush.xpose.msra.mxu0 0.0
    %771 = vmatpush.xpose.msra.mxu0 %v754
    %772 = vmatmul.f32.gmra.mxu0 %v751
    %v773 = vpop.f32.mrf.mxu0
    %v774 = vadd.f32 0.0, %v773
    %775 = vdwg.mxu0
    %v777 = vsel %vm645, %v642, 0
    %v780 = vsel %vm645, %v397, 0
    %782 = vmatpush.xpose.msra.mxu0 0.0
    %783 = vmatpush.xpose.msra.mxu0 0.0
    %784 = vmatpush.xpose.msra.mxu0 0.0
    %785 = vmatpush.xpose.msra.mxu0 0.0
    %786 = vmatpush.xpose.msra.mxu0 0.0
    %787 = vmatpush.xpose.msra.mxu0 0.0
    %788 = vmatpush.xpose.msra.mxu0 0.0
    %789 = vmatpush.xpose.msra.mxu0 0.0
    %790 = vmatpush.xpose.msra.mxu0 0.0
    %791 = vmatpush.xpose.msra.mxu0 0.0
    %792 = vmatpush.xpose.msra.mxu0 0.0
    %793 = vmatpush.xpose.msra.mxu0 0.0
    %794 = vmatpush.xpose.msra.mxu0 0.0
    %795 = vmatpush.xpose.msra.mxu0 0.0
    %796 = vmatpush.xpose.msra.mxu0 0.0
    %797 = vmatpush.xpose.msra.mxu0 %v780
    %798 = vmatmul.f32.gmra.mxu0 %v777
    %v799 = vpop.f32.mrf.mxu0
    %v800 = vadd.f32 0.0, %v799
    %801 = vdwg.mxu0
    %v803 = vsel %vm645, %v643, 0
    %v806 = vsel %vm645, %v417, 0
    %808 = vmatpush.xpose.msra.mxu0 0.0
    %809 = vmatpush.xpose.msra.mxu0 0.0
    %810 = vmatpush.xpose.msra.mxu0 0.0
    %811 = vmatpush.xpose.msra.mxu0 0.0
    %812 = vmatpush.xpose.msra.mxu0 0.0
    %813 = vmatpush.xpose.msra.mxu0 0.0
    %814 = vmatpush.xpose.msra.mxu0 0.0
    %815 = vmatpush.xpose.msra.mxu0 0.0
    %816 = vmatpush.xpose.msra.mxu0 0.0
    %817 = vmatpush.xpose.msra.mxu0 0.0
    %818 = vmatpush.xpose.msra.mxu0 0.0
    %819 = vmatpush.xpose.msra.mxu0 0.0
    %820 = vmatpush.xpose.msra.mxu0 0.0
    %821 = vmatpush.xpose.msra.mxu0 0.0
    %822 = vmatpush.xpose.msra.mxu0 0.0
    %823 = vmatpush.xpose.msra.mxu0 %v806
    %824 = vmatmul.f32.gmra.mxu0 %v803
    %v825 = vpop.f32.mrf.mxu0
    %v826 = vadd.f32 0.0, %v825
    %827 = vdwg.mxu0
    %v829 = vsel %vm645, %v644, 0
    %v832 = vsel %vm645, %v437, 0
    %834 = vmatpush.xpose.msra.mxu0 0.0
    %835 = vmatpush.xpose.msra.mxu0 0.0
    %836 = vmatpush.xpose.msra.mxu0 0.0
    %837 = vmatpush.xpose.msra.mxu0 0.0
    %838 = vmatpush.xpose.msra.mxu0 0.0
    %839 = vmatpush.xpose.msra.mxu0 0.0
    %840 = vmatpush.xpose.msra.mxu0 0.0
    %841 = vmatpush.xpose.msra.mxu0 0.0
    %842 = vmatpush.xpose.msra.mxu0 0.0
    %843 = vmatpush.xpose.msra.mxu0 0.0
    %844 = vmatpush.xpose.msra.mxu0 0.0
    %845 = vmatpush.xpose.msra.mxu0 0.0
    %846 = vmatpush.xpose.msra.mxu0 0.0
    %847 = vmatpush.xpose.msra.mxu0 0.0
    %848 = vmatpush.xpose.msra.mxu0 0.0
    %849 = vmatpush.xpose.msra.mxu0 %v832
    %850 = vmatmul.f32.gmra.mxu0 %v829
    %v851 = vpop.f32.mrf.mxu0
    %v852 = vadd.f32 0.0, %v851
    %853 = vdwg.mxu0
    %v854 = vsel %vm645, %v670, -inf
    %855 = vmax.xlane.f32.xlu0 %v854
    %v856 = vpop.xlane.xlu0 %855
    %v857 = vsel %vm645, %v696, -inf
    %858 = vmax.xlane.f32.xlu0 %v857
    %v859 = vpop.xlane.xlu0 %858
    %v860 = vsel %vm645, %v722, -inf
    %861 = vmax.xlane.f32.xlu0 %v860
    %v862 = vpop.xlane.xlu0 %861
    %v863 = vsel %vm645, %v748, -inf
    %864 = vmax.xlane.f32.xlu0 %v863
    %v865 = vpop.xlane.xlu0 %864
    %v866 = vsel %vm645, %v774, -inf
    %867 = vmax.xlane.f32.xlu0 %v866
    %v868 = vpop.xlane.xlu0 %867
    %v869 = vsel %vm645, %v800, -inf
    %870 = vmax.xlane.f32.xlu0 %v869
    %v871 = vpop.xlane.xlu0 %870
    %v872 = vsel %vm645, %v826, -inf
    %873 = vmax.xlane.f32.xlu0 %v872
    %v874 = vpop.xlane.xlu0 %873
    %v875 = vsel %vm645, %v852, -inf
    %876 = vmax.xlane.f32.xlu0 %v875
    %v877 = vpop.xlane.xlu0 %876
    %v878 = vsub.f32 %v670, %v856
    %v879 = vsub.f32 %v696, %v859
    %v880 = vsub.f32 %v722, %v862
    %v881 = vsub.f32 %v748, %v865
    %v882 = vsub.f32 %v774, %v868
    %v883 = vsub.f32 %v800, %v871
    %v884 = vsub.f32 %v826, %v874
    %v885 = vsub.f32 %v852, %v877
    %v886 = vmul.f32 %v878, 1.442695
    %v887 = vpow.pop %v886
    %v888 = vmul.f32 %v879, 1.442695
    %v889 = vpow.pop %v888
    %v890 = vmul.f32 %v880, 1.442695
    %v891 = vpow.pop %v890
    %v892 = vmul.f32 %v881, 1.442695
    %v893 = vpow.pop %v892
    %v894 = vmul.f32 %v882, 1.442695
    %v895 = vpow.pop %v894
    %v896 = vmul.f32 %v883, 1.442695
    %v897 = vpow.pop %v896
    %v898 = vmul.f32 %v884, 1.442695
    %v899 = vpow.pop %v898
    %v900 = vmul.f32 %v885, 1.442695
    %v901 = vpow.pop %v900
    %v902 = vsel %vm645, %v887, 0.0
    %903 = vadd.xlane.f32.xlu0 %v902
    %v904 = vpop.xlane.xlu0 %903
    %v905 = vsel %vm645, %v889, 0.0
    %906 = vadd.xlane.f32.xlu0 %v905
    %v907 = vpop.xlane.xlu0 %906
    %v908 = vsel %vm645, %v891, 0.0
    %909 = vadd.xlane.f32.xlu0 %v908
    %v910 = vpop.xlane.xlu0 %909
    %v911 = vsel %vm645, %v893, 0.0
    %912 = vadd.xlane.f32.xlu0 %v911
    %v913 = vpop.xlane.xlu0 %912
    %v914 = vsel %vm645, %v895, 0.0
    %915 = vadd.xlane.f32.xlu0 %v914
    %v916 = vpop.xlane.xlu0 %915
    %v917 = vsel %vm645, %v897, 0.0
    %918 = vadd.xlane.f32.xlu0 %v917
    %v919 = vpop.xlane.xlu0 %918
    %v920 = vsel %vm645, %v899, 0.0
    %921 = vadd.xlane.f32.xlu0 %v920
    %v922 = vpop.xlane.xlu0 %921
    %v923 = vsel %vm645, %v901, 0.0
    %924 = vadd.xlane.f32.xlu0 %v923
    %v925 = vpop.xlane.xlu0 %924
    %v926 = vrcp.pop %v904
    %v927 = vmul.f32 %v904, %v926
    %v928 = vsub.f32 1.0, %v927
    %v929 = vmul.f32 %v926, %v928
    %v930 = vadd.f32 %v926, %v929
    %vm931 = vweird.f32 %v904
    %vm932 = vweird.f32 %v926
    %vm933 = vmor %vm931, %vm932
    %v934 = vsel %vm933, %v926, %v930
    %v935 = vand.u32 2147483647, %v904
    %vm936 = vcmp.eq.f32.partialorder %v935, 8.507059e+37
    %v937 = vand.u32 %v904, 2147483648
    %v938 = vor.u32 1.1754944e-38, %v937
    %v939 = vsel %vm936, %v938, %v934
    %v940 = vmul.f32 %v887, %v939
    %v941 = vrcp.pop %v907
    %v942 = vmul.f32 %v907, %v941
    %v943 = vsub.f32 1.0, %v942
    %v944 = vmul.f32 %v941, %v943
    %v945 = vadd.f32 %v941, %v944
    %vm946 = vweird.f32 %v907
    %vm947 = vweird.f32 %v941
    %vm948 = vmor %vm946, %vm947
    %v949 = vsel %vm948, %v941, %v945
    %v950 = vand.u32 2147483647, %v907
    %vm951 = vcmp.eq.f32.partialorder %v950, 8.507059e+37
    %v952 = vand.u32 %v907, 2147483648
    %v953 = vor.u32 1.1754944e-38, %v952
    %v954 = vsel %vm951, %v953, %v949
    %v955 = vmul.f32 %v889, %v954
    %v956 = vrcp.pop %v910
    %v957 = vmul.f32 %v910, %v956
    %v958 = vsub.f32 1.0, %v957
    %v959 = vmul.f32 %v956, %v958
    %v960 = vadd.f32 %v956, %v959
    %vm961 = vweird.f32 %v910
    %vm962 = vweird.f32 %v956
    %vm963 = vmor %vm961, %vm962
    %v964 = vsel %vm963, %v956, %v960
    %v965 = vand.u32 2147483647, %v910
    %vm966 = vcmp.eq.f32.partialorder %v965, 8.507059e+37
    %v967 = vand.u32 %v910, 2147483648
    %v968 = vor.u32 1.1754944e-38, %v967
    %v969 = vsel %vm966, %v968, %v964
    %v970 = vmul.f32 %v891, %v969
    %v971 = vrcp.pop %v913
    %v972 = vmul.f32 %v913, %v971
    %v973 = vsub.f32 1.0, %v972
    %v974 = vmul.f32 %v971, %v973
    %v975 = vadd.f32 %v971, %v974
    %vm976 = vweird.f32 %v913
    %vm977 = vweird.f32 %v971
    %vm978 = vmor %vm976, %vm977
    %v979 = vsel %vm978, %v971, %v975
    %v980 = vand.u32 2147483647, %v913
    %vm981 = vcmp.eq.f32.partialorder %v980, 8.507059e+37
    %v982 = vand.u32 %v913, 2147483648
    %v983 = vor.u32 1.1754944e-38, %v982
    %v984 = vsel %vm981, %v983, %v979
    %v985 = vmul.f32 %v893, %v984
    %v986 = vrcp.pop %v916
    %v987 = vmul.f32 %v916, %v986
    %v988 = vsub.f32 1.0, %v987
    %v989 = vmul.f32 %v986, %v988
    %v990 = vadd.f32 %v986, %v989
    %vm991 = vweird.f32 %v916
    %vm992 = vweird.f32 %v986
    %vm993 = vmor %vm991, %vm992
    %v994 = vsel %vm993, %v986, %v990
    %v995 = vand.u32 2147483647, %v916
    %vm996 = vcmp.eq.f32.partialorder %v995, 8.507059e+37
    %v997 = vand.u32 %v916, 2147483648
    %v998 = vor.u32 1.1754944e-38, %v997
    %v999 = vsel %vm996, %v998, %v994
    %v1000 = vmul.f32 %v895, %v999
    %v1001 = vrcp.pop %v919
    %v1002 = vmul.f32 %v919, %v1001
    %v1003 = vsub.f32 1.0, %v1002
    %v1004 = vmul.f32 %v1001, %v1003
    %v1005 = vadd.f32 %v1001, %v1004
    %vm1006 = vweird.f32 %v919
    %vm1007 = vweird.f32 %v1001
    %vm1008 = vmor %vm1006, %vm1007
    %v1009 = vsel %vm1008, %v1001, %v1005
    %v1010 = vand.u32 2147483647, %v919
    %vm1011 = vcmp.eq.f32.partialorder %v1010, 8.507059e+37
    %v1012 = vand.u32 %v919, 2147483648
    %v1013 = vor.u32 1.1754944e-38, %v1012
    %v1014 = vsel %vm1011, %v1013, %v1009
    %v1015 = vmul.f32 %v897, %v1014
    %v1016 = vrcp.pop %v922
    %v1017 = vmul.f32 %v922, %v1016
    %v1018 = vsub.f32 1.0, %v1017
    %v1019 = vmul.f32 %v1016, %v1018
    %v1020 = vadd.f32 %v1016, %v1019
    %vm1021 = vweird.f32 %v922
    %vm1022 = vweird.f32 %v1016
    %vm1023 = vmor %vm1021, %vm1022
    %v1024 = vsel %vm1023, %v1016, %v1020
    %v1025 = vand.u32 2147483647, %v922
    %vm1026 = vcmp.eq.f32.partialorder %v1025, 8.507059e+37
    %v1027 = vand.u32 %v922, 2147483648
    %v1028 = vor.u32 1.1754944e-38, %v1027
    %v1029 = vsel %vm1026, %v1028, %v1024
    %v1030 = vmul.f32 %v899, %v1029
    %v1031 = vrcp.pop %v925
    %v1032 = vmul.f32 %v925, %v1031
    %v1033 = vsub.f32 1.0, %v1032
    %v1034 = vmul.f32 %v1031, %v1033
    %v1035 = vadd.f32 %v1031, %v1034
    %vm1036 = vweird.f32 %v925
    %vm1037 = vweird.f32 %v1031
    %vm1038 = vmor %vm1036, %vm1037
    %v1039 = vsel %vm1038, %v1031, %v1035
    %v1040 = vand.u32 2147483647, %v925
    %vm1041 = vcmp.eq.f32.partialorder %v1040, 8.507059e+37
    %v1042 = vand.u32 %v925, 2147483648
    %v1043 = vor.u32 1.1754944e-38, %v1042
    %v1044 = vsel %vm1041, %v1043, %v1039
    %v1045 = vmul.f32 %v901, %v1044
    %1046 = vst.msk [vmem:[#allocation4] sm:$0xff] %vm645, %v940
    %1047 = vst.msk [vmem:[#allocation4 + $0x8] sm:$0xff] %vm645, %v955
    %1048 = vst.msk [vmem:[#allocation4 + $0x10] sm:$0xff] %vm645, %v970
    %1049 = vst.msk [vmem:[#allocation4 + $0x18] sm:$0xff] %vm645, %v985
    %1050 = vst.msk [vmem:[#allocation4 + $0x20] sm:$0xff] %vm645, %v1000
    %1051 = vst.msk [vmem:[#allocation4 + $0x28] sm:$0xff] %vm645, %v1015
    %1052 = vst.msk [vmem:[#allocation4 + $0x30] sm:$0xff] %vm645, %v1030
    %1053 = vst.msk [vmem:[#allocation4 + $0x38] sm:$0xff] %vm645, %v1045
    %v1055 = vsel %vm645, %v940, 0
    %1057 = vmatpush.msra.mxu0 0.0
    %1058 = vmatpush.msra.mxu0 0.0
    %1059 = vmatpush.msra.mxu0 0.0
    %1060 = vmatpush.msra.mxu0 0.0
    %1061 = vmatpush.msra.mxu0 0.0
    %1062 = vmatpush.msra.mxu0 0.0
    %1063 = vmatpush.msra.mxu0 0.0
    %1064 = vmatpush.msra.mxu0 0.0
    %1065 = vmatpush.msra.mxu0 0.0
    %1066 = vmatpush.msra.mxu0 0.0
    %1067 = vmatpush.msra.mxu0 0.0
    %1068 = vmatpush.msra.mxu0 0.0
    %1069 = vmatpush.msra.mxu0 0.0
    %1070 = vmatpush.msra.mxu0 0.0
    %1071 = vmatpush.msra.mxu0 0.0
    %1072 = vmatpush.msra.mxu0 %v492
    %1073 = vmatmul.f32.gmra.mxu0 %v1055
    %v1074 = vpop.f32.mrf.mxu0
    %v1075 = vadd.f32 0.0, %v1074
    %1076 = vdwg.mxu0
    %v1078 = vsel %vm645, %v955, 0
    %1080 = vmatpush.msra.mxu0 0.0
    %1081 = vmatpush.msra.mxu0 0.0
    %1082 = vmatpush.msra.mxu0 0.0
    %1083 = vmatpush.msra.mxu0 0.0
    %1084 = vmatpush.msra.mxu0 0.0
    %1085 = vmatpush.msra.mxu0 0.0
    %1086 = vmatpush.msra.mxu0 0.0
    %1087 = vmatpush.msra.mxu0 0.0
    %1088 = vmatpush.msra.mxu0 0.0
    %1089 = vmatpush.msra.mxu0 0.0
    %1090 = vmatpush.msra.mxu0 0.0
    %1091 = vmatpush.msra.mxu0 0.0
    %1092 = vmatpush.msra.mxu0 0.0
    %1093 = vmatpush.msra.mxu0 0.0
    %1094 = vmatpush.msra.mxu0 0.0
    %1095 = vmatpush.msra.mxu0 %v512
    %1096 = vmatmul.f32.gmra.mxu0 %v1078
    %v1097 = vpop.f32.mrf.mxu0
    %v1098 = vadd.f32 0.0, %v1097
    %1099 = vdwg.mxu0
    %v1101 = vsel %vm645, %v970, 0
    %1103 = vmatpush.msra.mxu0 0.0
    %1104 = vmatpush.msra.mxu0 0.0
    %1105 = vmatpush.msra.mxu0 0.0
    %1106 = vmatpush.msra.mxu0 0.0
    %1107 = vmatpush.msra.mxu0 0.0
    %1108 = vmatpush.msra.mxu0 0.0
    %1109 = vmatpush.msra.mxu0 0.0
    %1110 = vmatpush.msra.mxu0 0.0
    %1111 = vmatpush.msra.mxu0 0.0
    %1112 = vmatpush.msra.mxu0 0.0
    %1113 = vmatpush.msra.mxu0 0.0
    %1114 = vmatpush.msra.mxu0 0.0
    %1115 = vmatpush.msra.mxu0 0.0
    %1116 = vmatpush.msra.mxu0 0.0
    %1117 = vmatpush.msra.mxu0 0.0
    %1118 = vmatpush.msra.mxu0 %v532
    %1119 = vmatmul.f32.gmra.mxu0 %v1101
    %v1120 = vpop.f32.mrf.mxu0
    %v1121 = vadd.f32 0.0, %v1120
    %1122 = vdwg.mxu0
    %v1124 = vsel %vm645, %v985, 0
    %1126 = vmatpush.msra.mxu0 0.0
    %1127 = vmatpush.msra.mxu0 0.0
    %1128 = vmatpush.msra.mxu0 0.0
    %1129 = vmatpush.msra.mxu0 0.0
    %1130 = vmatpush.msra.mxu0 0.0
    %1131 = vmatpush.msra.mxu0 0.0
    %1132 = vmatpush.msra.mxu0 0.0
    %1133 = vmatpush.msra.mxu0 0.0
    %1134 = vmatpush.msra.mxu0 0.0
    %1135 = vmatpush.msra.mxu0 0.0
    %1136 = vmatpush.msra.mxu0 0.0
    %1137 = vmatpush.msra.mxu0 0.0
    %1138 = vmatpush.msra.mxu0 0.0
    %1139 = vmatpush.msra.mxu0 0.0
    %1140 = vmatpush.msra.mxu0 0.0
    %1141 = vmatpush.msra.mxu0 %v552
    %1142 = vmatmul.f32.gmra.mxu0 %v1124
    %v1143 = vpop.f32.mrf.mxu0
    %v1144 = vadd.f32 0.0, %v1143
    %1145 = vdwg.mxu0
    %v1147 = vsel %vm645, %v1000, 0
    %1149 = vmatpush.msra.mxu0 0.0
    %1150 = vmatpush.msra.mxu0 0.0
    %1151 = vmatpush.msra.mxu0 0.0
    %1152 = vmatpush.msra.mxu0 0.0
    %1153 = vmatpush.msra.mxu0 0.0
    %1154 = vmatpush.msra.mxu0 0.0
    %1155 = vmatpush.msra.mxu0 0.0
    %1156 = vmatpush.msra.mxu0 0.0
    %1157 = vmatpush.msra.mxu0 0.0
    %1158 = vmatpush.msra.mxu0 0.0
    %1159 = vmatpush.msra.mxu0 0.0
    %1160 = vmatpush.msra.mxu0 0.0
    %1161 = vmatpush.msra.mxu0 0.0
    %1162 = vmatpush.msra.mxu0 0.0
    %1163 = vmatpush.msra.mxu0 0.0
    %1164 = vmatpush.msra.mxu0 %v575
    %1165 = vmatmul.f32.gmra.mxu0 %v1147
    %v1166 = vpop.f32.mrf.mxu0
    %v1167 = vadd.f32 0.0, %v1166
    %1168 = vdwg.mxu0
    %v1170 = vsel %vm645, %v1015, 0
    %1172 = vmatpush.msra.mxu0 0.0
    %1173 = vmatpush.msra.mxu0 0.0
    %1174 = vmatpush.msra.mxu0 0.0
    %1175 = vmatpush.msra.mxu0 0.0
    %1176 = vmatpush.msra.mxu0 0.0
    %1177 = vmatpush.msra.mxu0 0.0
    %1178 = vmatpush.msra.mxu0 0.0
    %1179 = vmatpush.msra.mxu0 0.0
    %1180 = vmatpush.msra.mxu0 0.0
    %1181 = vmatpush.msra.mxu0 0.0
    %1182 = vmatpush.msra.mxu0 0.0
    %1183 = vmatpush.msra.mxu0 0.0
    %1184 = vmatpush.msra.mxu0 0.0
    %1185 = vmatpush.msra.mxu0 0.0
    %1186 = vmatpush.msra.mxu0 0.0
    %1187 = vmatpush.msra.mxu0 %v595
    %1188 = vmatmul.f32.gmra.mxu0 %v1170
    %v1189 = vpop.f32.mrf.mxu0
    %v1190 = vadd.f32 0.0, %v1189
    %1191 = vdwg.mxu0
    %v1193 = vsel %vm645, %v1030, 0
    %1195 = vmatpush.msra.mxu0 0.0
    %1196 = vmatpush.msra.mxu0 0.0
    %1197 = vmatpush.msra.mxu0 0.0
    %1198 = vmatpush.msra.mxu0 0.0
    %1199 = vmatpush.msra.mxu0 0.0
    %1200 = vmatpush.msra.mxu0 0.0
    %1201 = vmatpush.msra.mxu0 0.0
    %1202 = vmatpush.msra.mxu0 0.0
    %1203 = vmatpush.msra.mxu0 0.0
    %1204 = vmatpush.msra.mxu0 0.0
    %1205 = vmatpush.msra.mxu0 0.0
    %1206 = vmatpush.msra.mxu0 0.0
    %1207 = vmatpush.msra.mxu0 0.0
    %1208 = vmatpush.msra.mxu0 0.0
    %1209 = vmatpush.msra.mxu0 0.0
    %1210 = vmatpush.msra.mxu0 %v615
    %1211 = vmatmul.f32.gmra.mxu0 %v1193
    %v1212 = vpop.f32.mrf.mxu0
    %v1213 = vadd.f32 0.0, %v1212
    %1214 = vdwg.mxu0
    %v1216 = vsel %vm645, %v1045, 0
    %1218 = vmatpush.msra.mxu0 0.0
    %1219 = vmatpush.msra.mxu0 0.0
    %1220 = vmatpush.msra.mxu0 0.0
    %1221 = vmatpush.msra.mxu0 0.0
    %1222 = vmatpush.msra.mxu0 0.0
    %1223 = vmatpush.msra.mxu0 0.0
    %1224 = vmatpush.msra.mxu0 0.0
    %1225 = vmatpush.msra.mxu0 0.0
    %1226 = vmatpush.msra.mxu0 0.0
    %1227 = vmatpush.msra.mxu0 0.0
    %1228 = vmatpush.msra.mxu0 0.0
    %1229 = vmatpush.msra.mxu0 0.0
    %1230 = vmatpush.msra.mxu0 0.0
    %1231 = vmatpush.msra.mxu0 0.0
    %1232 = vmatpush.msra.mxu0 0.0
    %1233 = vmatpush.msra.mxu0 %v635
    %1234 = vmatmul.f32.gmra.mxu0 %v1216
    %v1235 = vpop.f32.mrf.mxu0
    %v1236 = vadd.f32 0.0, %v1235
    %1237 = vdwg.mxu0
    %v1238 = vld [vmem:[%s6] sm:$0xff]
    %v1239 = vld [vmem:[%s6 + $0x8] sm:$0xff]
    %v1240 = vld [vmem:[%s6 + $0x10] sm:$0xff]
    %v1241 = vld [vmem:[%s6 + $0x18] sm:$0xff]
    %v1242 = vld [vmem:[%s6 + $0x20] sm:$0xff]
    %v1243 = vld [vmem:[%s6 + $0x28] sm:$0xff]
    %v1244 = vld [vmem:[%s6 + $0x30] sm:$0xff]
    %v1245 = vld [vmem:[%s6 + $0x38] sm:$0xff]
    %v1247 = vsel %vm645, %v1075, 0
    %1249 = vmatpush.msra.mxu0 0.0
    %1250 = vmatpush.msra.mxu0 0.0
    %1251 = vmatpush.msra.mxu0 0.0
    %1252 = vmatpush.msra.mxu0 0.0
    %1253 = vmatpush.msra.mxu0 0.0
    %1254 = vmatpush.msra.mxu0 0.0
    %1255 = vmatpush.msra.mxu0 0.0
    %1256 = vmatpush.msra.mxu0 0.0
    %1257 = vmatpush.msra.mxu0 0.0
    %1258 = vmatpush.msra.mxu0 0.0
    %1259 = vmatpush.msra.mxu0 0.0
    %1260 = vmatpush.msra.mxu0 0.0
    %1261 = vmatpush.msra.mxu0 0.0
    %1262 = vmatpush.msra.mxu0 0.0
    %1263 = vmatpush.msra.mxu0 0.0
    %1264 = vmatpush.msra.mxu0 %v1238
    %1265 = vmatmul.f32.gmra.mxu0 %v1247
    %v1266 = vpop.f32.mrf.mxu0
    %v1267 = vadd.f32 0.0, %v1266
    %1268 = vdwg.mxu0
    %v1270 = vsel %vm645, %v1098, 0
    %1272 = vmatpush.msra.mxu0 0.0
    %1273 = vmatpush.msra.mxu0 0.0
    %1274 = vmatpush.msra.mxu0 0.0
    %1275 = vmatpush.msra.mxu0 0.0
    %1276 = vmatpush.msra.mxu0 0.0
    %1277 = vmatpush.msra.mxu0 0.0
    %1278 = vmatpush.msra.mxu0 0.0
    %1279 = vmatpush.msra.mxu0 0.0
    %1280 = vmatpush.msra.mxu0 0.0
    %1281 = vmatpush.msra.mxu0 0.0
    %1282 = vmatpush.msra.mxu0 0.0
    %1283 = vmatpush.msra.mxu0 0.0
    %1284 = vmatpush.msra.mxu0 0.0
    %1285 = vmatpush.msra.mxu0 0.0
    %1286 = vmatpush.msra.mxu0 0.0
    %1287 = vmatpush.msra.mxu0 %v1239
    %1288 = vmatmul.f32.gmra.mxu0 %v1270
    %v1289 = vpop.f32.mrf.mxu0
    %v1290 = vadd.f32 0.0, %v1289
    %1291 = vdwg.mxu0
    %v1293 = vsel %vm645, %v1121, 0
    %1295 = vmatpush.msra.mxu0 0.0
    %1296 = vmatpush.msra.mxu0 0.0
    %1297 = vmatpush.msra.mxu0 0.0
    %1298 = vmatpush.msra.mxu0 0.0
    %1299 = vmatpush.msra.mxu0 0.0
    %1300 = vmatpush.msra.mxu0 0.0
    %1301 = vmatpush.msra.mxu0 0.0
    %1302 = vmatpush.msra.mxu0 0.0
    %1303 = vmatpush.msra.mxu0 0.0
    %1304 = vmatpush.msra.mxu0 0.0
    %1305 = vmatpush.msra.mxu0 0.0
    %1306 = vmatpush.msra.mxu0 0.0
    %1307 = vmatpush.msra.mxu0 0.0
    %1308 = vmatpush.msra.mxu0 0.0
    %1309 = vmatpush.msra.mxu0 0.0
    %1310 = vmatpush.msra.mxu0 %v1240
    %1311 = vmatmul.f32.gmra.mxu0 %v1293
    %v1312 = vpop.f32.mrf.mxu0
    %v1313 = vadd.f32 0.0, %v1312
    %1314 = vdwg.mxu0
    %v1316 = vsel %vm645, %v1144, 0
    %1318 = vmatpush.msra.mxu0 0.0
    %1319 = vmatpush.msra.mxu0 0.0
    %1320 = vmatpush.msra.mxu0 0.0
    %1321 = vmatpush.msra.mxu0 0.0
    %1322 = vmatpush.msra.mxu0 0.0
    %1323 = vmatpush.msra.mxu0 0.0
    %1324 = vmatpush.msra.mxu0 0.0
    %1325 = vmatpush.msra.mxu0 0.0
    %1326 = vmatpush.msra.mxu0 0.0
    %1327 = vmatpush.msra.mxu0 0.0
    %1328 = vmatpush.msra.mxu0 0.0
    %1329 = vmatpush.msra.mxu0 0.0
    %1330 = vmatpush.msra.mxu0 0.0
    %1331 = vmatpush.msra.mxu0 0.0
    %1332 = vmatpush.msra.mxu0 0.0
    %1333 = vmatpush.msra.mxu0 %v1241
    %1334 = vmatmul.f32.gmra.mxu0 %v1316
    %v1335 = vpop.f32.mrf.mxu0
    %v1336 = vadd.f32 0.0, %v1335
    %1337 = vdwg.mxu0
    %v1339 = vsel %vm645, %v1167, 0
    %1341 = vmatpush.msra.mxu0 0.0
    %1342 = vmatpush.msra.mxu0 0.0
    %1343 = vmatpush.msra.mxu0 0.0
    %1344 = vmatpush.msra.mxu0 0.0
    %1345 = vmatpush.msra.mxu0 0.0
    %1346 = vmatpush.msra.mxu0 0.0
    %1347 = vmatpush.msra.mxu0 0.0
    %1348 = vmatpush.msra.mxu0 0.0
    %1349 = vmatpush.msra.mxu0 0.0
    %1350 = vmatpush.msra.mxu0 0.0
    %1351 = vmatpush.msra.mxu0 0.0
    %1352 = vmatpush.msra.mxu0 0.0
    %1353 = vmatpush.msra.mxu0 0.0
    %1354 = vmatpush.msra.mxu0 0.0
    %1355 = vmatpush.msra.mxu0 0.0
    %1356 = vmatpush.msra.mxu0 %v1242
    %1357 = vmatmul.f32.gmra.mxu0 %v1339
    %v1358 = vpop.f32.mrf.mxu0
    %v1359 = vadd.f32 0.0, %v1358
    %1360 = vdwg.mxu0
    %v1362 = vsel %vm645, %v1190, 0
    %1364 = vmatpush.msra.mxu0 0.0
    %1365 = vmatpush.msra.mxu0 0.0
    %1366 = vmatpush.msra.mxu0 0.0
    %1367 = vmatpush.msra.mxu0 0.0
    %1368 = vmatpush.msra.mxu0 0.0
    %1369 = vmatpush.msra.mxu0 0.0
    %1370 = vmatpush.msra.mxu0 0.0
    %1371 = vmatpush.msra.mxu0 0.0
    %1372 = vmatpush.msra.mxu0 0.0
    %1373 = vmatpush.msra.mxu0 0.0
    %1374 = vmatpush.msra.mxu0 0.0
    %1375 = vmatpush.msra.mxu0 0.0
    %1376 = vmatpush.msra.mxu0 0.0
    %1377 = vmatpush.msra.mxu0 0.0
    %1378 = vmatpush.msra.mxu0 0.0
    %1379 = vmatpush.msra.mxu0 %v1243
    %1380 = vmatmul.f32.gmra.mxu0 %v1362
    %v1381 = vpop.f32.mrf.mxu0
    %v1382 = vadd.f32 0.0, %v1381
    %1383 = vdwg.mxu0
    %v1385 = vsel %vm645, %v1213, 0
    %1387 = vmatpush.msra.mxu0 0.0
    %1388 = vmatpush.msra.mxu0 0.0
    %1389 = vmatpush.msra.mxu0 0.0
    %1390 = vmatpush.msra.mxu0 0.0
    %1391 = vmatpush.msra.mxu0 0.0
    %1392 = vmatpush.msra.mxu0 0.0
    %1393 = vmatpush.msra.mxu0 0.0
    %1394 = vmatpush.msra.mxu0 0.0
    %1395 = vmatpush.msra.mxu0 0.0
    %1396 = vmatpush.msra.mxu0 0.0
    %1397 = vmatpush.msra.mxu0 0.0
    %1398 = vmatpush.msra.mxu0 0.0
    %1399 = vmatpush.msra.mxu0 0.0
    %1400 = vmatpush.msra.mxu0 0.0
    %1401 = vmatpush.msra.mxu0 0.0
    %1402 = vmatpush.msra.mxu0 %v1244
    %1403 = vmatmul.f32.gmra.mxu0 %v1385
    %v1404 = vpop.f32.mrf.mxu0
    %v1405 = vadd.f32 0.0, %v1404
    %1406 = vdwg.mxu0
    %v1408 = vsel %vm645, %v1236, 0
    %1410 = vmatpush.msra.mxu0 0.0
    %1411 = vmatpush.msra.mxu0 0.0
    %1412 = vmatpush.msra.mxu0 0.0
    %1413 = vmatpush.msra.mxu0 0.0
    %1414 = vmatpush.msra.mxu0 0.0
    %1415 = vmatpush.msra.mxu0 0.0
    %1416 = vmatpush.msra.mxu0 0.0
    %1417 = vmatpush.msra.mxu0 0.0
    %1418 = vmatpush.msra.mxu0 0.0
    %1419 = vmatpush.msra.mxu0 0.0
    %1420 = vmatpush.msra.mxu0 0.0
    %1421 = vmatpush.msra.mxu0 0.0
    %1422 = vmatpush.msra.mxu0 0.0
    %1423 = vmatpush.msra.mxu0 0.0
    %1424 = vmatpush.msra.mxu0 0.0
    %1425 = vmatpush.msra.mxu0 %v1245
    %1426 = vmatmul.f32.gmra.mxu0 %v1408
    %v1427 = vpop.f32.mrf.mxu0
    %v1428 = vadd.f32 0.0, %v1427
    %1429 = vdwg.mxu0
    %v1430 = vld [vmem:[%s7] sm:$0x1]
    %v1431 = vld [vmem:[%s8] sm:$0x1]
    %v1432 = vadd.f32 %v1267, %v1290
    %v1433 = vadd.f32 %v1432, %v1313
    %v1434 = vadd.f32 %v1433, %v1336
    %v1435 = vadd.f32 %v1434, %v36
    %v1436 = vsel %vm74, %v1435, 0.0
    %1437 = vadd.xlane.f32.xlu0 %v1436
    %v1438 = vpop.xlane.xlu0 %1437
    %v1439 = vrcp.pop 32.0
    %v1440 = vmul.f32 32.0, %v1439
    %v1441 = vsub.f32 1.0, %v1440
    %v1442 = vmul.f32 %v1439, %v1441
    %v1443 = vadd.f32 %v1439, %v1442
    %vm1444 = vweird.f32 %v1439
    %v1445 = vsel %vm1444, %v1439, %v1443
    %v1446 = vmul.f32 %v1438, %v1445
    %v1447 = vsub.f32 %v1435, %v1446
    %v1448 = vmul.f32 %v1447, %v1447
    %v1449 = vsel %vm74, %v1448, 0.0
    %1450 = vadd.xlane.f32.xlu0 %v1449
    %v1451 = vpop.xlane.xlu0 %1450
    %v1452 = vmul.f32 %v1451, %v1445
    %v1453 = vadd.f32 %v1452, 1e-06
    %v1454 = vrsqrt.pop %v1453
    %v1455 = vmul.f32 %v1454, %v1453
    %v1456 = vmul.f32 %v1455, %v1454
    %v1457 = vmul.f32 0.5, %v1456
    %v1458 = vsub.f32 1.5, %v1457
    %v1459 = vmul.f32 %v1454, %v1458
    %vm1460 = vweird.f32 %v1453
    %vm1461 = vweird.f32 %v1454
    %vm1462 = vmor %vm1460, %vm1461
    %v1463 = vsel %vm1462, %v1454, %v1459
    %v1464 = vmul.f32 %v1447, %v1463
    %v1466 = vperm.slane %v1430, 0
    %v1468 = vmul.f32 %v1464, %v1466
    %v1470 = vperm.slane %v1431, 0
    %v1472 = vadd.f32 %v1468, %v1470
    %1473 = vst.msk [vmem:[#allocation2] sm:$0xff] %vm74, %v1472
    %v1474 = vadd.f32 %v1359, %v1382
    %v1475 = vadd.f32 %v1474, %v1405
    %v1476 = vadd.f32 %v1475, %v1428
    %v1477 = vadd.f32 %v1476, %v37
    %v1478 = vsel %vm74, %v1477, 0.0
    %1479 = vadd.xlane.f32.xlu0 %v1478
    %v1480 = vpop.xlane.xlu0 %1479
    %v1481 = vmul.f32 %v1480, %v1445
    %v1482 = vsub.f32 %v1477, %v1481
    %v1483 = vmul.f32 %v1482, %v1482
    %v1484 = vsel %vm74, %v1483, 0.0
    %1485 = vadd.xlane.f32.xlu0 %v1484
    %v1486 = vpop.xlane.xlu0 %1485
    %v1487 = vmul.f32 %v1486, %v1445
    %v1488 = vadd.f32 %v1487, 1e-06
    %v1489 = vrsqrt.pop %v1488
    %v1490 = vmul.f32 %v1489, %v1488
    %v1491 = vmul.f32 %v1490, %v1489
    %v1492 = vmul.f32 0.5, %v1491
    %v1493 = vsub.f32 1.5, %v1492
    %v1494 = vmul.f32 %v1489, %v1493
    %vm1495 = vweird.f32 %v1488
    %vm1496 = vweird.f32 %v1489
    %vm1497 = vmor %vm1495, %vm1496
    %v1498 = vsel %vm1497, %v1489, %v1494
    %v1499 = vmul.f32 %v1482, %v1498
    %v1500 = vmul.f32 %v1499, %v1466
    %v1501 = vadd.f32 %v1500, %v1470
    %s1502 = scalar_lea.vmem [#allocation2], 8
    %1503 = vst.msk [vmem:[%s1502] sm:$0xff] %vm74, %v1501
    // Predicated region
    $region38: #{multi_head_attention.1} parent=1 // pred_check
      _
    $region39: #{multi_head_attention.1} parent=1 // pred_check_branch
      %1505 = sbr.rel (0) target = $region41
    $region40: #{multi_head_attention.1} parent=1 // pred_region
      %1507 = vsyncadd [#allocation3], 0
      %s1508 = sshll.u32 [#allocation2], 4
      %s1509 = int_to_ptr.vmem [resolvable:$true] %s1508
      %s1510 = sshll.u32 %s9, 4
      %s1511 = int_to_ptr.hbm [resolvable:$true] %s1510
      %1516 = dma.vmem_to_hbm [thread:$0]  %s1509, 256, %s1511, [#allocation3], 128, 128, 8
    $region41: #{multi_head_attention.1} parent=1 // pred_fallthru
      _
    // Predicated region
    $region42: #{multi_head_attention.1} parent=1 // pred_check
      _
    $region43: #{multi_head_attention.1} parent=1 // pred_check_branch
      %1518 = sbr.rel (0) target = $region45
    $region44: #{multi_head_attention.1} parent=1 // pred_region
      %1520 = vsyncadd [#allocation5], 0
      %s1521 = sshll.u32 [#allocation4], 4
      %s1522 = int_to_ptr.vmem [resolvable:$true] %s1521
      %s1523 = sshll.u32 %s10, 4
      %s1524 = int_to_ptr.hbm [resolvable:$true] %s1523
      %1529 = dma.vmem_to_hbm [thread:$0]  %s1522, 1024, %s1524, [#allocation5], 128, 128, 8
    $region45: #{multi_head_attention.1} parent=1 // pred_fallthru
      _
    // Predicated region
    $region46: #{multi_head_attention.1} parent=1 // pred_check
      _
    $region47: #{multi_head_attention.1} parent=1 // pred_check_branch
      %1531 = sbr.rel (0) target = $region49
    $region48: #{multi_head_attention.1} parent=1 // pred_region
      %1533 = dma.done [#allocation3], 256
    $region49: #{multi_head_attention.1} parent=1 // pred_fallthru
      _
    // Predicated region
    $region50: #{multi_head_attention.1} parent=1 // pred_check
      _
    $region51: #{multi_head_attention.1} parent=1 // pred_check_branch
      %1535 = sbr.rel (0) target = $region53
    $region52: #{multi_head_attention.1} parent=1 // pred_region
      %1537 = dma.done [#allocation5], 1024
    $region53: #{multi_head_attention.1} parent=1 // pred_fallthru
      _
    %1538 = vsyncpa [#allocation3], 1
    %1539 = vsyncpa [#allocation5], 1

</llo_original>
